<compile_context>
chip_gen: v7x
topology: tpu7x:2x2x1
jax: 0.10.0
libtpu: 0.0.40
codegen_flags: <defaults>
</compile_context>

<pallas_src>
import functools

import jax
import jax.numpy as jnp
from jax.experimental import pallas as pl
from jax.experimental.pallas import tpu as pltpu


def gatv2_row_kernel(qt_ref, k_ref, feat_ref, adj_ref, wa_ref,
                     out_ref, scores_ref, *, tc):
    """One (batch, row-tile) grid step.

    qt_ref   : (1, H, T)  bf16   q^T, resident across row tiles of a batch
    k_ref    : (1, tm, H) bf16   k rows for this tile
    feat_ref : (1, T, C)  bf16   original features, resident (aggregation side)
    adj_ref  : (1, tm, T) int8   adjacency row tile (0 / 1)
    wa_ref   : (1, H)     f32    attention vector
    out_ref  : (1, tm, C) f32    output row tile
    scores_ref: (tm, T)   f32    VMEM scratch for the lane-dense score tile
    """
    tm = k_ref.shape[1]
    T = qt_ref.shape[2]

    # Row-tile key projection, upcast once per step (f32 VALU on every gen).
    k_tile = k_ref[0].astype(jnp.float32)                    # [tm, H]
    wa_b = wa_ref[...][:, :, None]                            # [1, H, 1] f32

    # j-chunked pairwise relu + wa-weighted reduce over H, lane-dense in T.
    # Static Python loop: tc / T are compile-time constants, slices are static.
    for c in range(T // tc):
        qt_c = qt_ref[0, :, c * tc:(c + 1) * tc].astype(jnp.float32)   # [H, tc]
        e = jax.nn.relu(qt_c[None, :, :] + k_tile[:, :, None])         # [tm,H,tc]
        scores_ref[:, c * tc:(c + 1) * tc] = jnp.sum(e * wa_b, axis=1)  # [tm, tc]

    # Fused adjacency mask + row-wise (over j) numerically stable softmax.
    scores = scores_ref[...]                                  # [tm, T] f32
    keep = adj_ref[0].astype(jnp.float32)                     # 0.0 / 1.0
    logits = jnp.where(keep > 0.0, scores, -1e22)
    m = jnp.max(logits, axis=-1, keepdims=True)
    ex = jnp.exp(logits - m)
    p = ex / jnp.sum(ex, axis=-1, keepdims=True)              # exact reciprocal

    # Attention-weighted aggregation of the original features (bf16 MXU,
    # f32 accumulate).  p is already lane-dense in T -> right layout here too.
    out_ref[0] = jnp.dot(
        p.astype(jnp.bfloat16), feat_ref[0],
        preferred_element_type=jnp.float32,
    ).astype(out_ref.dtype)


def _choose_col_chunk(T, max_chunk=512):
    """j-axis slab width for the pairwise tensor (divides T, prefer k*128)."""
    if T <= max_chunk:
        return T
    best = None
    for d in range(max_chunk, 0, -1):
        if T % d == 0:
            if d % 128 == 0:
                return d
            if best is None:
                best = d
    return best or T


def _choose_row_tile(T, C, H, tc, budget_bytes):
    """Largest legal row tile whose per-step working set fits the budget."""
    cands = [d for d in range(T, 0, -1)
             if T % d == 0 and (d % 8 == 0 or d == T)]
    for tm in cands:
        need = (3 * tm * tc * H * 4        # pairwise chunk + temporaries (f32)
                + 4 * tm * T * 4           # scores scratch + logits/ex/p
                + 2 * tm * T * 1           # double-buffered adj tile (int8)
                + 2 * tm * H * 2           # double-buffered k tile (bf16)
                + 2 * tm * C * 4           # double-buffered out tile (f32)
                + tm * T * 2               # p cast to bf16
                + H * T * 2 + T * C * 2    # resident q^T / feat blocks (bf16)
                + H * 4)                   # wa
        if need <= budget_bytes:
            return tm
    return cands[-1] if cands else T


def gatv2_forward(feat, adj, w1, w2, wa, *, tm=None, tc=None,
                  vmem_limit_bytes=48 * 1024 * 1024):
    B, T, C = feat.shape
    H = w1.shape[0]

    # --- Hoisted pre-processing (once per call, outside the row-tile loop) ---
    # Projections computed once per batch element (not once per row tile).
    q = jnp.einsum("btc,hc->bth", feat, w1)                    # [B, T, H] f32
    k = jnp.einsum("btc,hc->bth", feat, w2)                    # [B, T, H] f32
    qt = jnp.swapaxes(q, 1, 2).astype(jnp.bfloat16)            # [B, H, T] bf16
    k_bf = k.astype(jnp.bfloat16)                              # [B, T, H] bf16
    feat_bf = feat.astype(jnp.bfloat16)                        # half feat stream
    adj_i8 = (adj > 0).astype(jnp.int8)                        # 4x smaller stream
    wa_row = wa.astype(jnp.float32).reshape(1, H)              # [1, H]

    if tc is None:
        tc = _choose_col_chunk(T)
    assert T % tc == 0, f"column chunk {tc} must divide T={T}"
    if tm is None:
        tm = _choose_row_tile(T, C, H, tc,
                              budget_bytes=int(0.6 * vmem_limit_bytes))
    assert T % tm == 0, f"row tile {tm} must divide T={T}"

    grid = (B, T // tm)
    kernel = functools.partial(gatv2_row_kernel, tc=tc)
    return pl.pallas_call(
        kernel,
        out_shape=jax.ShapeDtypeStruct((B, T, C), feat.dtype),
        grid_spec=pltpu.PrefetchScalarGridSpec(
            num_scalar_prefetch=0,
            grid=grid,
            in_specs=[
                pl.BlockSpec((1, H, T), lambda b, i: (b, 0, 0)),    # q^T resident
                pl.BlockSpec((1, tm, H), lambda b, i: (b, i, 0)),   # k row tile
                pl.BlockSpec((1, T, C), lambda b, i: (b, 0, 0)),    # feat resident
                # If the adj DMA becomes exposed after the compute trims,
                # add pipeline_mode=pl.Buffered(3) here.
                pl.BlockSpec((1, tm, T), lambda b, i: (b, i, 0)),   # adj (int8)
                pl.BlockSpec((1, H), lambda b, i: (0, 0)),          # wa
            ],
            out_specs=pl.BlockSpec((1, tm, C), lambda b, i: (b, i, 0)),
            scratch_shapes=[pltpu.VMEM((tm, T), jnp.float32)],      # score tile
        ),
        compiler_params=pltpu.CompilerParams(
            dimension_semantics=("parallel", "parallel"),
            vmem_limit_bytes=vmem_limit_bytes,
        ),
    )(qt, k_bf, feat_bf, adj_i8, wa_row)


def gatv2_reference(feat, adj, w1, w2, wa):
    q = jnp.einsum("btc,hc->bth", feat, w1)
    k = jnp.einsum("btc,hc->bth", feat, w2)
    e = jax.nn.relu(q[:, None, :, :] + k[:, :, None, :])              # [B,T,T,H]
    scores = jnp.einsum("bijh,h->bij", e, wa[0])
    mask = jnp.where(adj > 0.0, 0.0, -1e22).astype(jnp.float32)
    p = jax.nn.softmax(scores + mask, axis=-1)
    return jnp.einsum("bij,bjc->bic", p, feat)


if __name__ == "__main__":
    B, T, in_ch, att_dim = 2, 64, 16, 32

    key = jax.random.PRNGKey(0)
    k_feat, k_adj, k_w1, k_w2, k_wa = jax.random.split(key, 5)

    feat = jax.random.normal(k_feat, (B, T, in_ch), dtype=jnp.float32)
    # Random binary adjacency; force self-loops so every softmax row is valid.
    # (Fully masked rows degenerate to uniform attention — same as the
    #  reference / PyTorch masked-fill semantics.)
    adj = jax.random.bernoulli(k_adj, 0.4, (B, T, T)).astype(jnp.float32)
    adj = jnp.maximum(adj, jnp.eye(T, dtype=jnp.float32)[None])

    # Deterministic parameter init (shapes match nn.Linear weights [out, in]).
    w1 = jax.random.normal(k_w1, (att_dim, in_ch), dtype=jnp.float32) * 0.1
    w2 = jax.random.normal(k_w2, (att_dim, in_ch), dtype=jnp.float32) * 0.1
    wa = jax.random.normal(k_wa, (1, att_dim), dtype=jnp.float32) * 0.1

    # tm=32 -> two row tiles per batch element; tc=32 -> two j chunks per tile,
    # so both the row-tiled and the j-chunked paths are exercised.
    out = gatv2_forward(feat, adj, w1, w2, wa, tm=32, tc=32)
    out = jax.block_until_ready(out)

    ref = gatv2_reference(feat, adj, w1, w2, wa)
    assert out.shape == (B, T, in_ch)
    max_err = float(jnp.max(jnp.abs(out - ref)))
    # bf16 q/k/feat/p operands (f32 accumulate) -> loosen tolerance vs f32 ref.
    assert jnp.allclose(out, ref, atol=3e-2, rtol=3e-2), (
        f"mismatch vs reference (max abs err {max_err:.4e})")

    print("KERNEL_OK")
</pallas_src>

<mosaic_0001>
module attributes {stable_mosaic.version = 11 : i64} {
  func.func @gatv2_row_kernel(%arg0: i32, %arg1: i32, %arg2: memref<1x32x64xbf16, #tpu.memory_space<vmem>>, %arg3: memref<1x32x32xbf16, #tpu.memory_space<vmem>>, %arg4: memref<1x64x16xbf16, #tpu.memory_space<vmem>>, %arg5: memref<1x32x64xi8, #tpu.memory_space<vmem>>, %arg6: memref<1x32xf32, #tpu.memory_space<vmem>>, %arg7: memref<1x32x16xf32, #tpu.memory_space<vmem>>, %arg8: memref<32x64xf32, #tpu.memory_space<vmem>>) attributes {dimension_semantics = [#tpu.dimension_semantics<parallel>, #tpu.dimension_semantics<parallel>], iteration_bounds = array<i64: 2, 2>, scalar_prefetch = 0 : i64, scratch_operands = 1 : i64, tpu.core_type = #tpu.core_type<tc>, window_params = [{transform_indices = @transform_0, window_bounds = array<i64: 1, 32, 64>}, {transform_indices = @transform_1, window_bounds = array<i64: 1, 32, 32>}, {transform_indices = @transform_2, window_bounds = array<i64: 1, 64, 16>}, {transform_indices = @transform_3, window_bounds = array<i64: 1, 32, 64>}, {pipeline_mode = #tpu.pipeline_mode<synchronous>, transform_indices = @transform_4, window_bounds = array<i64: 1, 32>}, {transform_indices = @transform_5, window_bounds = array<i64: 1, 32, 16>}]} {
    %c0 = arith.constant 0 : index
    %c0_0 = arith.constant 0 : index
    %c0_1 = arith.constant 0 : index
    %0 = vector.load %arg3[%c0, %c0_0, %c0_1] : memref<1x32x32xbf16, #tpu.memory_space<vmem>>, vector<1x32x32xbf16>
    %1 = vector.shape_cast %0 : vector<1x32x32xbf16> to vector<32x32xbf16>
    %2 = arith.extf %1 : vector<32x32xbf16> to vector<32x32xf32>
    %c0_2 = arith.constant 0 : index
    %c0_3 = arith.constant 0 : index
    %3 = vector.load %arg6[%c0_2, %c0_3] : memref<1x32xf32, #tpu.memory_space<vmem>>, vector<1x32xf32>
    %4 = vector.shape_cast %3 : vector<1x32xf32> to vector<1x32x1xf32>
    %c0_4 = arith.constant 0 : index
    %c0_5 = arith.constant 0 : index
    %c0_6 = arith.constant 0 : index
    %5 = vector.load %arg2[%c0_4, %c0_5, %c0_6] : memref<1x32x64xbf16, #tpu.memory_space<vmem>>, vector<1x32x32xbf16>
    %6 = vector.shape_cast %5 : vector<1x32x32xbf16> to vector<32x32xbf16>
    %7 = arith.extf %6 : vector<32x32xbf16> to vector<32x32xf32>
    %8 = vector.shape_cast %7 : vector<32x32xf32> to vector<1x32x32xf32>
    %9 = vector.shape_cast %2 : vector<32x32xf32> to vector<32x32x1xf32>
    %10 = vector.broadcast %8 : vector<1x32x32xf32> to vector<32x32x32xf32>
    %11 = vector.broadcast %9 : vector<32x32x1xf32> to vector<32x32x32xf32>
    %12 = arith.addf %10, %11 : vector<32x32x32xf32>
    %cst = arith.constant 0.000000e+00 : f32
    %13 = vector.broadcast %cst : f32 to vector<32x32x32xf32>
    %14 = arith.maximumf %12, %13 : vector<32x32x32xf32>
    %15 = vector.broadcast %4 : vector<1x32x1xf32> to vector<32x32x32xf32>
    %16 = arith.mulf %14, %15 : vector<32x32x32xf32>
    %cst_7 = arith.constant dense<0.000000e+00> : vector<32x32xf32>
    %17 = vector.multi_reduction <add>, %16, %cst_7 [1] : vector<32x32x32xf32> to vector<32x32xf32>
    %c0_8 = arith.constant 0 : index
    %c0_9 = arith.constant 0 : index
    %18 = vector.load %arg8[%c0_8, %c0_9] : memref<32x64xf32, #tpu.memory_space<vmem>>, vector<32x32xf32>
    tpu.vector_store %arg8[%c0_8, %c0_9], %17 {strides = array<i32>} : memref<32x64xf32, #tpu.memory_space<vmem>>, vector<32x32xf32>,
    %c0_10 = arith.constant 0 : index
    %c0_11 = arith.constant 0 : index
    %c32 = arith.constant 32 : index
    %19 = vector.load %arg2[%c0_10, %c0_11, %c32] : memref<1x32x64xbf16, #tpu.memory_space<vmem>>, vector<1x32x32xbf16>
    %20 = vector.shape_cast %19 : vector<1x32x32xbf16> to vector<32x32xbf16>
    %21 = arith.extf %20 : vector<32x32xbf16> to vector<32x32xf32>
    %22 = vector.shape_cast %21 : vector<32x32xf32> to vector<1x32x32xf32>
    %23 = vector.shape_cast %2 : vector<32x32xf32> to vector<32x32x1xf32>
    %24 = vector.broadcast %22 : vector<1x32x32xf32> to vector<32x32x32xf32>
    %25 = vector.broadcast %23 : vector<32x32x1xf32> to vector<32x32x32xf32>
    %26 = arith.addf %24, %25 : vector<32x32x32xf32>
    %cst_12 = arith.constant 0.000000e+00 : f32
    %27 = vector.broadcast %cst_12 : f32 to vector<32x32x32xf32>
    %28 = arith.maximumf %26, %27 : vector<32x32x32xf32>
    %29 = vector.broadcast %4 : vector<1x32x1xf32> to vector<32x32x32xf32>
    %30 = arith.mulf %28, %29 : vector<32x32x32xf32>
    %cst_13 = arith.constant dense<0.000000e+00> : vector<32x32xf32>
    %31 = vector.multi_reduction <add>, %30, %cst_13 [1] : vector<32x32x32xf32> to vector<32x32xf32>
    %c0_14 = arith.constant 0 : index
    %c32_15 = arith.constant 32 : index
    %32 = vector.load %arg8[%c0_14, %c32_15] : memref<32x64xf32, #tpu.memory_space<vmem>>, vector<32x32xf32>
    tpu.vector_store %arg8[%c0_14, %c32_15], %31 {strides = array<i32>} : memref<32x64xf32, #tpu.memory_space<vmem>>, vector<32x32xf32>,
    %c0_16 = arith.constant 0 : index
    %c0_17 = arith.constant 0 : index
    %33 = vector.load %arg8[%c0_16, %c0_17] : memref<32x64xf32, #tpu.memory_space<vmem>>, vector<32x64xf32>
    %c0_18 = arith.constant 0 : index
    %c0_19 = arith.constant 0 : index
    %c0_20 = arith.constant 0 : index
    %34 = vector.load %arg5[%c0_18, %c0_19, %c0_20] : memref<1x32x64xi8, #tpu.memory_space<vmem>>, vector<1x32x64xi8>
    %35 = vector.shape_cast %34 : vector<1x32x64xi8> to vector<32x64xi8>
    %36 = arith.sitofp %35 : vector<32x64xi8> to vector<32x64xf32>
    %cst_21 = arith.constant 0.000000e+00 : f32
    %37 = vector.broadcast %cst_21 : f32 to vector<32x64xf32>
    %38 = arith.cmpf ogt, %36, %37 : vector<32x64xf32>
    %cst_22 = arith.constant -9.99999977E+21 : f32
    %39 = vector.broadcast %cst_22 : f32 to vector<32x64xf32>
    %40 = arith.select %38, %33, %39 : vector<32x64xi1>, vector<32x64xf32>
    %cst_23 = arith.constant dense<0xFF800000> : vector<32xf32>
    %41 = vector.multi_reduction <maximumf>, %40, %cst_23 [1] : vector<32x64xf32> to vector<32xf32>
    %42 = vector.shape_cast %41 : vector<32xf32> to vector<32x1xf32>
    %43 = vector.broadcast %42 : vector<32x1xf32> to vector<32x64xf32>
    %44 = arith.subf %40, %43 : vector<32x64xf32>
    %45 = math.exp %44 : vector<32x64xf32>
    %cst_24 = arith.constant dense<0.000000e+00> : vector<32xf32>
    %46 = vector.multi_reduction <add>, %45, %cst_24 [1] : vector<32x64xf32> to vector<32xf32>
    %47 = vector.shape_cast %46 : vector<32xf32> to vector<32x1xf32>
    %48 = vector.broadcast %47 : vector<32x1xf32> to vector<32x64xf32>
    %49 = arith.divf %45, %48 : vector<32x64xf32>
    %50 = arith.truncf %49 : vector<32x64xf32> to vector<32x64xbf16>
    %c0_25 = arith.constant 0 : index
    %c0_26 = arith.constant 0 : index
    %c0_27 = arith.constant 0 : index
    %51 = vector.load %arg4[%c0_25, %c0_26, %c0_27] : memref<1x64x16xbf16, #tpu.memory_space<vmem>>, vector<1x64x16xbf16>
    %52 = vector.shape_cast %51 : vector<1x64x16xbf16> to vector<64x16xbf16>
    %cst_28 = arith.constant dense<0.000000e+00> : vector<32x16xf32>
    %53 = tpu.matmul %50, %52, %cst_28 {dimension_numbers = #tpu.dot_dimension_numbers<[1], [0], [0], [1], [0, 0, 1, 1], [], []>} : vector<32x64xbf16>, vector<64x16xbf16>, vector<32x16xf32> -> vector<32x16xf32>
    %c0_29 = arith.constant 0 : index
    %c0_30 = arith.constant 0 : index
    %c0_31 = arith.constant 0 : index
    %54 = vector.load %arg7[%c0_29, %c0_30, %c0_31] : memref<1x32x16xf32, #tpu.memory_space<vmem>>, vector<1x32x16xf32>
    %55 = vector.shape_cast %54 : vector<1x32x16xf32> to vector<32x16xf32>
    %56 = vector.shape_cast %53 : vector<32x16xf32> to vector<1x32x16xf32>
    tpu.vector_store %arg7[%c0_29, %c0_30, %c0_31], %56 {strides = array<i32>} : memref<1x32x16xf32, #tpu.memory_space<vmem>>, vector<1x32x16xf32>,
    return
  }
  func.func @transform_0(%arg0: i32, %arg1: i32) -> (i32, i32, i32) {
    %c0_i32 = arith.constant 0 : i32
    %c0_i32_0 = arith.constant 0 : i32
    %c0_i32_1 = arith.constant 0 : i32
    return %arg0, %c0_i32, %c0_i32_0 : i32, i32, i32
  }
  func.func @transform_1(%arg0: i32, %arg1: i32) -> (i32, i32, i32) {
    %c0_i32 = arith.constant 0 : i32
    %c0_i32_0 = arith.constant 0 : i32
    return %arg0, %arg1, %c0_i32 : i32, i32, i32
  }
  func.func @transform_2(%arg0: i32, %arg1: i32) -> (i32, i32, i32) {
    %c0_i32 = arith.constant 0 : i32
    %c0_i32_0 = arith.constant 0 : i32
    %c0_i32_1 = arith.constant 0 : i32
    return %arg0, %c0_i32, %c0_i32_0 : i32, i32, i32
  }
  func.func @transform_3(%arg0: i32, %arg1: i32) -> (i32, i32, i32) {
    %c0_i32 = arith.constant 0 : i32
    %c0_i32_0 = arith.constant 0 : i32
    return %arg0, %arg1, %c0_i32 : i32, i32, i32
  }
  func.func @transform_4(%arg0: i32, %arg1: i32) -> (i32, i32) {
    %c0_i32 = arith.constant 0 : i32
    %c0_i32_0 = arith.constant 0 : i32
    %c0_i32_1 = arith.constant 0 : i32
    return %c0_i32, %c0_i32_0 : i32, i32
  }
  func.func @transform_5(%arg0: i32, %arg1: i32) -> (i32, i32, i32) {
    %c0_i32 = arith.constant 0 : i32
    %c0_i32_0 = arith.constant 0 : i32
    return %arg0, %arg1, %c0_i32 : i32, i32, i32
  }
}

</mosaic_0001>

<llo_original>
// kernel: tpu_custom_call.1
$region0: #{tpu_custom_call.1}
  #allocation0 [shape = 'u32[]', space=smem, size = 0x4, offset = 0x4, fixed_abs, tag = 'smem constant byte address 0x4 - core index']
  #allocation1 [shape = 'u32[144,128]{1,0:T(1,128)}', space=vmem, size = 0x12000, scoped, tag = 'internal scratch']
  #allocation2 [shape = 'f32[32,64]{1,0:T(8,128)}', space=vmem, size = 0x4000, scoped, tag = 'scratch operand']
  %s0 = inlined_call_operand.vmem [shape: bf16[2,32,64], index: 0, kind: input, shape index: {}]
  %s1 = inlined_call_operand.vmem [shape: bf16[2,64,32], index: 1, kind: input, shape index: {}]
  %s2 = inlined_call_operand.vmem [shape: bf16[2,64,16], index: 2, kind: input, shape index: {}]
  %s3 = inlined_call_operand.vmem [shape: s8[2,64,64], index: 3, kind: input, shape index: {}]
  %s4 = inlined_call_operand.vmem [shape: f32[1,32], index: 4, kind: input, shape index: {}]
  %s5 = inlined_call_operand.vmem [shape: f32[2,64,16], index: 5, kind: output, shape index: {}]
  %s6 = sld [smem:[#allocation0]]
  $region53: #{tpu_custom_call.1} parent=0
    _
  %s8 = ssub.s32 1, %s6
  %s9 = scalar_select 0, %s8, %s6
  loop: start=0, step=1, limit=6
  $region2: #{tpu_custom_call.1} parent=0 // loop_pre_header
    _
  $region3: #{tpu_custom_call.1} parent=0 // loop_header
    %s11 = sphi 0, %s15
    %p12 = scmp.ge.s32.totalorder %s11, 6
    %s18 = sphi 0, %s30
    %s19 = sphi 0, %s26
    %s20 = sphi 0, %s18
    %s21 = sphi 0, %s19
    %s22 = sphi 0, %s20
    %s23 = sphi 0, %s21
    %s33 = sphi 0, %s35
    %s36 = sphi 0, %s33
    %s37 = sphi 0, %s36
    %s53 = sphi 0, %s37
    %s61 = sphi 0, %s63
    %s64 = sphi 0, %s61
    %s65 = sphi 0, %s64
    %s81 = sphi 0, %s65
    %s87 = sphi 0, %s89
    %s90 = sphi 0, %s87
    %s91 = sphi 0, %s90
    %s107 = sphi 0, %s91
    %s115 = sphi 0, %s117
    %s118 = sphi 0, %s115
    %s119 = sphi 0, %s118
    %s135 = sphi 0, %s119
    %s139 = sphi 0, %s139
    %s141 = sphi 0, %s139
    %s142 = sphi 0, %s141
    %s156 = sphi 0, %s142
    %s164 = sphi 0, %s166
    %s167 = sphi 0, %s164
    %s168 = sphi 0, %s167
    %s184 = sphi 0, %s168
  $region4: #{tpu_custom_call.1} parent=0 // loop_header_branch
    %14 = sbr.rel (%p12) target = $region8
  $region5: #{tpu_custom_call.1} parent=0 // loop_body
    %s16 = ssub.s32 %s11, 1
    %s17 = ssub.s32 %s11, 2
    %s24 = sadd.s32 1, %s19
    %p25 = scmp.ge.s32.totalorder %s24, 2
    %s26 = scalar_select %p25, 0, %s24
    %s27 = sadd.s32 1, %s18
    %s28 = scalar_select %p25, %s27, %s18
    %p29 = scmp.ge.s32.totalorder %s28, 2
    %s30 = scalar_select %p29, 0, %s28
    %s31 = ssub.s32 %s18, %s30
    %p32 = scmp.eq.s32.totalorder %s31, 0
    %s34 = sadd.s32 %s33, 1
    %s35 = scalar_select %p32, %s33, %s34
    %p38 = pneg %p32
    %p39 = scmp.eq.s32.totalorder %s11, 3
    %p40 = por %p38, %p39
    %p41 = scmp.ne.s32.totalorder %s33, %s36
    %p42 = scmp.eq.s32.totalorder %s11, 0
    %p43 = por %p41, %p42
    %p44 = scmp.ne.s32.totalorder %s33, %s36
    %p45 = scmp.eq.s32.totalorder %s16, 3
    %p46 = por %p44, %p45
    %p47 = scmp.ne.s32.totalorder %s36, %s37
    %p48 = scmp.eq.s32.totalorder %s16, 0
    %p49 = por %p47, %p48
    %p50 = scmp.ne.s32.totalorder %s36, %s37
    %p51 = scmp.eq.s32.totalorder %s17, 3
    %p52 = por %p50, %p51
    %p54 = scmp.ne.s32.totalorder %s37, %s53
    %p55 = scmp.eq.s32.totalorder %s17, 0
    %p56 = por %p54, %p55
    %s57 = ssub.s32 %s18, %s30
    %s58 = ssub.s32 %s19, %s26
    %s59 = sor.u32 %s57, %s58
    %p60 = scmp.eq.s32.totalorder %s59, 0
    %s62 = sadd.s32 %s61, 1
    %s63 = scalar_select %p60, %s61, %s62
    %p66 = pneg %p60
    %p67 = scmp.eq.s32.totalorder %s11, 3
    %p68 = por %p66, %p67
    %p69 = scmp.ne.s32.totalorder %s61, %s64
    %p70 = scmp.eq.s32.totalorder %s11, 0
    %p71 = por %p69, %p70
    %p72 = scmp.ne.s32.totalorder %s61, %s64
    %p73 = scmp.eq.s32.totalorder %s16, 3
    %p74 = por %p72, %p73
    %p75 = scmp.ne.s32.totalorder %s64, %s65
    %p76 = scmp.eq.s32.totalorder %s16, 0
    %p77 = por %p75, %p76
    %p78 = scmp.ne.s32.totalorder %s64, %s65
    %p79 = scmp.eq.s32.totalorder %s17, 3
    %p80 = por %p78, %p79
    %p82 = scmp.ne.s32.totalorder %s65, %s81
    %p83 = scmp.eq.s32.totalorder %s17, 0
    %p84 = por %p82, %p83
    %s85 = ssub.s32 %s18, %s30
    %p86 = scmp.eq.s32.totalorder %s85, 0
    %s88 = sadd.s32 %s87, 1
    %s89 = scalar_select %p86, %s87, %s88
    %p92 = pneg %p86
    %p93 = scmp.eq.s32.totalorder %s11, 3
    %p94 = por %p92, %p93
    %p95 = scmp.ne.s32.totalorder %s87, %s90
    %p96 = scmp.eq.s32.totalorder %s11, 0
    %p97 = por %p95, %p96
    %p98 = scmp.ne.s32.totalorder %s87, %s90
    %p99 = scmp.eq.s32.totalorder %s16, 3
    %p100 = por %p98, %p99
    %p101 = scmp.ne.s32.totalorder %s90, %s91
    %p102 = scmp.eq.s32.totalorder %s16, 0
    %p103 = por %p101, %p102
    %p104 = scmp.ne.s32.totalorder %s90, %s91
    %p105 = scmp.eq.s32.totalorder %s17, 3
    %p106 = por %p104, %p105
    %p108 = scmp.ne.s32.totalorder %s91, %s107
    %p109 = scmp.eq.s32.totalorder %s17, 0
    %p110 = por %p108, %p109
    %s111 = ssub.s32 %s18, %s30
    %s112 = ssub.s32 %s19, %s26
    %s113 = sor.u32 %s111, %s112
    %p114 = scmp.eq.s32.totalorder %s113, 0
    %s116 = sadd.s32 %s115, 1
    %s117 = scalar_select %p114, %s115, %s116
    %p120 = pneg %p114
    %p121 = scmp.eq.s32.totalorder %s11, 3
    %p122 = por %p120, %p121
    %p123 = scmp.ne.s32.totalorder %s115, %s118
    %p124 = scmp.eq.s32.totalorder %s11, 0
    %p125 = por %p123, %p124
    %p126 = scmp.ne.s32.totalorder %s115, %s118
    %p127 = scmp.eq.s32.totalorder %s16, 3
    %p128 = por %p126, %p127
    %p129 = scmp.ne.s32.totalorder %s118, %s119
    %p130 = scmp.eq.s32.totalorder %s16, 0
    %p131 = por %p129, %p130
    %p132 = scmp.ne.s32.totalorder %s118, %s119
    %p133 = scmp.eq.s32.totalorder %s17, 3
    %p134 = por %p132, %p133
    %p136 = scmp.ne.s32.totalorder %s119, %s135
    %p137 = scmp.eq.s32.totalorder %s17, 0
    %p138 = por %p136, %p137
    %s140 = sadd.s32 %s139, 1
    %p143 = scmp.eq.s32.totalorder %s11, 3
    %p144 = scmp.ne.s32.totalorder %s139, %s141
    %p145 = scmp.eq.s32.totalorder %s11, 0
    %p146 = por %p144, %p145
    %p147 = scmp.ne.s32.totalorder %s139, %s141
    %p148 = scmp.eq.s32.totalorder %s16, 3
    %p149 = por %p147, %p148
    %p150 = scmp.ne.s32.totalorder %s141, %s142
    %p151 = scmp.eq.s32.totalorder %s16, 0
    %p152 = por %p150, %p151
    %p153 = scmp.ne.s32.totalorder %s141, %s142
    %p154 = scmp.eq.s32.totalorder %s17, 3
    %p155 = por %p153, %p154
    %p157 = scmp.ne.s32.totalorder %s142, %s156
    %p158 = scmp.eq.s32.totalorder %s17, 0
    %p159 = por %p157, %p158
    %s160 = ssub.s32 %s18, %s30
    %s161 = ssub.s32 %s19, %s26
    %s162 = sor.u32 %s160, %s161
    %p163 = scmp.eq.s32.totalorder %s162, 0
    %s165 = sadd.s32 %s164, 1
    %s166 = scalar_select %p163, %s164, %s165
    %p169 = pneg %p163
    %p170 = scmp.eq.s32.totalorder %s11, 3
    %p171 = por %p169, %p170
    %p172 = scmp.ne.s32.totalorder %s164, %s167
    %p173 = scmp.eq.s32.totalorder %s11, 0
    %p174 = por %p172, %p173
    %p175 = scmp.ne.s32.totalorder %s164, %s167
    %p176 = scmp.eq.s32.totalorder %s16, 3
    %p177 = por %p175, %p176
    %p178 = scmp.ne.s32.totalorder %s167, %s168
    %p179 = scmp.eq.s32.totalorder %s16, 0
    %p180 = por %p178, %p179
    %p181 = scmp.ne.s32.totalorder %s167, %s168
    %p182 = scmp.eq.s32.totalorder %s17, 3
    %p183 = por %p181, %p182
    %p185 = scmp.ne.s32.totalorder %s168, %s184
    %p186 = scmp.eq.s32.totalorder %s17, 0
    %p187 = por %p185, %p186
    %p188 = scmp.le.s32.totalorder 1, %s11
    %p189 = scmp.lt.s32.totalorder %s11, 5
    %p190 = pnand %p188, %p189
    %p191 = pneg %p190
    // Predicated region
    $region9: #{tpu_custom_call.1} parent=5 // pred_check
      _
    $region10: #{tpu_custom_call.1} parent=5 // pred_check_branch
      %193 = sbr.rel (%p190) target = $region12
    $region11: #{tpu_custom_call.1} parent=5 // pred_region
      %s194 = ssub.s32 %s11, 1
      // Predicated region
      $region13: #{tpu_custom_call.1} parent=11 // pred_check
        %p195 = pneg %p152
      $region14: #{tpu_custom_call.1} parent=11 // pred_check_branch
        %197 = sbr.rel (%p195) target = $region16
      $region15: #{tpu_custom_call.1} parent=11 // pred_region
        _
      $region16: #{tpu_custom_call.1} parent=11 // pred_fallthru
        _
    $region12: #{tpu_custom_call.1} parent=5 // pred_fallthru
      _
    %p198 = scmp.lt.s32.totalorder %s11, 4
    // Predicated region
    $region17: #{tpu_custom_call.1} parent=5 // pred_check
      %p199 = pneg %p198
    $region18: #{tpu_custom_call.1} parent=5 // pred_check_branch
      %201 = sbr.rel (%p199) target = $region20
    $region19: #{tpu_custom_call.1} parent=5 // pred_region
      // Predicated region
      $region21: #{tpu_custom_call.1} parent=19 // pred_check
        %p202 = pneg %p43
      $region22: #{tpu_custom_call.1} parent=19 // pred_check_branch
        %204 = sbr.rel (%p202) target = $region24
      $region23: #{tpu_custom_call.1} parent=19 // pred_region
        %p205 = scmp.lt.s32.totalorder %s18, 1
        %s206 = scalar_select %p205, %s18, 1
        %s207 = smul.addr %s206, 4
        %s208 = smul.addr %s207, 4
        %s209 = scalar_lea.vmem %s0, %s208
      $region24: #{tpu_custom_call.1} parent=19 // pred_fallthru
        _
      // Predicated region
      $region25: #{tpu_custom_call.1} parent=19 // pred_check
        %p210 = pneg %p71
      $region26: #{tpu_custom_call.1} parent=19 // pred_check_branch
        %212 = sbr.rel (%p210) target = $region28
      $region27: #{tpu_custom_call.1} parent=19 // pred_region
        %s213 = smul.u32 4, %s19
        %p214 = scmp.lt.s32.totalorder %s18, 1
        %s215 = scalar_select %p214, %s18, 1
        %p216 = scmp.lt.s32.totalorder %s213, 7
        %s217 = scalar_select %p216, %s213, 7
        %s218 = smul.addr %s215, 8
        %s219 = sadd.s32 %s217, %s218
        %s220 = smul.addr %s219, 4
        %s221 = scalar_lea.vmem %s1, %s220
        %s222 = smul.u32 4, %s19
      $region28: #{tpu_custom_call.1} parent=19 // pred_fallthru
        _
      // Predicated region
      $region29: #{tpu_custom_call.1} parent=19 // pred_check
        %p223 = pneg %p97
      $region30: #{tpu_custom_call.1} parent=19 // pred_check_branch
        %225 = sbr.rel (%p223) target = $region32
      $region31: #{tpu_custom_call.1} parent=19 // pred_region
        %p226 = scmp.lt.s32.totalorder %s18, 1
        %s227 = scalar_select %p226, %s18, 1
        %s228 = smul.addr %s227, 8
        %s229 = smul.addr %s228, 4
        %s230 = scalar_lea.vmem %s2, %s229
      $region32: #{tpu_custom_call.1} parent=19 // pred_fallthru
        _
      // Predicated region
      $region33: #{tpu_custom_call.1} parent=19 // pred_check
        %p231 = pneg %p125
      $region34: #{tpu_custom_call.1} parent=19 // pred_check_branch
        %233 = sbr.rel (%p231) target = $region36
      $region35: #{tpu_custom_call.1} parent=19 // pred_region
        %p234 = scmp.lt.s32.totalorder %s18, 1
        %s235 = scalar_select %p234, %s18, 1
        %p236 = scmp.lt.s32.totalorder %s19, 1
        %s237 = scalar_select %p236, %s19, 1
        %s238 = smul.addr %s235, 2
        %s239 = sadd.s32 %s237, %s238
        %s240 = smul.addr %s239, 8
        %s241 = scalar_lea.vmem %s3, %s240
      $region36: #{tpu_custom_call.1} parent=19 // pred_fallthru
        _
    $region20: #{tpu_custom_call.1} parent=5 // pred_fallthru
      _
    %p242 = scmp.le.s32.totalorder 1, %s11
    %p243 = scmp.lt.s32.totalorder %s11, 5
    %p244 = pnand %p242, %p243
    %p245 = pneg %p244
    // Predicated region
    $region37: #{tpu_custom_call.1} parent=5 // pred_check
      _
    $region38: #{tpu_custom_call.1} parent=5 // pred_check_branch
      %247 = sbr.rel (%p244) target = $region40
    $region39: #{tpu_custom_call.1} parent=5 // pred_region
      %s248 = ssub.s32 %s11, 1
      %p249 = scmp.lt.s32.totalorder %s20, 1
      %s250 = scalar_select %p249, %s20, 1
      %s251 = smul.addr %s250, 4
      %s252 = smul.addr %s251, 4
      %s253 = scalar_lea.vmem %s0, %s252
      %p254 = pneg %p49
      %p255 = pneg %p46
      %s256 = smul.u32 4, %s21
      %p257 = scmp.lt.s32.totalorder %s20, 1
      %s258 = scalar_select %p257, %s20, 1
      %p259 = scmp.lt.s32.totalorder %s256, 7
      %s260 = scalar_select %p259, %s256, 7
      %s261 = smul.addr %s258, 8
      %s262 = sadd.s32 %s260, %s261
      %s263 = smul.addr %s262, 4
      %s264 = scalar_lea.vmem %s1, %s263
      %p265 = pneg %p77
      %p266 = pneg %p74
      %p267 = scmp.lt.s32.totalorder %s20, 1
      %s268 = scalar_select %p267, %s20, 1
      %s269 = smul.addr %s268, 8
      %s270 = smul.addr %s269, 4
      %s271 = scalar_lea.vmem %s2, %s270
      %p272 = pneg %p103
      %p273 = pneg %p100
      %p274 = scmp.lt.s32.totalorder %s20, 1
      %s275 = scalar_select %p274, %s20, 1
      %p276 = scmp.lt.s32.totalorder %s21, 1
      %s277 = scalar_select %p276, %s21, 1
      %s278 = smul.addr %s275, 2
      %s279 = sadd.s32 %s277, %s278
      %s280 = smul.addr %s279, 8
      %s281 = scalar_lea.vmem %s3, %s280
      %p282 = pneg %p131
      %p283 = pneg %p128
      %p284 = pneg %p152
      %p285 = pneg %p149
      %p286 = pneg %p180
      %p287 = pneg %p177
      %s288 = smul.u32 4, %s21
      %p289 = scmp.lt.s32.totalorder %s20, 1
      %s290 = scalar_select %p289, %s20, 1
      %p291 = scmp.lt.s32.totalorder %s288, 7
      %s292 = scalar_select %p291, %s288, 7
      %s293 = smul.addr %s290, 8
      %s294 = sadd.s32 %s292, %s293
      %s295 = smul.addr %s294, 8
      %s296 = scalar_lea.vmem %s5, %s295
      %p297 = scmp.lt.s32.totalorder %s20, 1
      %s298 = scalar_select %p297, %s20, 1
      %s299 = smul.addr %s298, 4
      %s300 = smul.addr %s299, 4
      %s301 = scalar_lea.vmem %s0, %s300
      %s302 = smul.u32 4, %s21
      %p303 = scmp.lt.s32.totalorder %s20, 1
      %s304 = scalar_select %p303, %s20, 1
      %p305 = scmp.lt.s32.totalorder %s302, 7
      %s306 = scalar_select %p305, %s302, 7
      %s307 = smul.addr %s304, 8
      %s308 = sadd.s32 %s306, %s307
      %s309 = smul.addr %s308, 4
      %s310 = scalar_lea.vmem %s1, %s309
      %s311 = smul.u32 4, %s21
      %p312 = scmp.lt.s32.totalorder %s20, 1
      %s313 = scalar_select %p312, %s20, 1
      %s314 = smul.addr %s313, 8
      %s315 = smul.addr %s314, 4
      %s316 = scalar_lea.vmem %s2, %s315
      %p317 = scmp.lt.s32.totalorder %s20, 1
      %s318 = scalar_select %p317, %s20, 1
      %p319 = scmp.lt.s32.totalorder %s21, 1
      %s320 = scalar_select %p319, %s21, 1
      %s321 = smul.addr %s318, 2
      %s322 = sadd.s32 %s320, %s321
      %s323 = smul.addr %s322, 8
      %s324 = scalar_lea.vmem %s3, %s323
      %s325 = smul.u32 4, %s21
      %p326 = scmp.lt.s32.totalorder %s20, 1
      %s327 = scalar_select %p326, %s20, 1
      %p328 = scmp.lt.s32.totalorder %s325, 7
      %s329 = scalar_select %p328, %s325, 7
      %s330 = smul.addr %s327, 8
      %s331 = sadd.s32 %s329, %s330
      %s332 = smul.addr %s331, 8
      %s333 = scalar_lea.vmem %s5, %s332
      %s334 = smul.u32 4, %s21
      %v336 = vld [vmem:[%s310] sm:$0xf]
      %v337 = vld [vmem:[%s310 + $0x4] sm:$0xf]
      %v338 = vld [vmem:[%s310 + $0x8] sm:$0xf]
      %v339 = vld [vmem:[%s310 + $0xc] sm:$0xf]
      %v340 = vunpack.c.l.bf16 %v336
      %v341 = vunpack.c.l.bf16 %v337
      %v342 = vunpack.c.l.bf16 %v338
      %v343 = vunpack.c.l.bf16 %v339
      %v344 = vld [vmem:[%s4] sm:$0x1]
      %v345 = vlaneseq
      %v346 = vshrl.u32 %v345, 7
      %v347 = vsub.s32 0, %v346
      %v348 = vrot.slane %v344, %v347
      %350 = vbcast.lane.b32.xlu0 %v348, 256
      %v351 = vpop.permute.xlu0 %350
      %s353 = sor.u32 256, 8
      %354 = vbcast.lane.b32.xlu0 %v348, %s353
      %v355 = vpop.permute.xlu0 %354
      %s357 = sor.u32 256, 16
      %358 = vbcast.lane.b32.xlu0 %v348, %s357
      %v359 = vpop.permute.xlu0 %358
      %s361 = sor.u32 256, 24
      %362 = vbcast.lane.b32.xlu0 %v348, %s361
      %v363 = vpop.permute.xlu0 %362
      %v364 = vld [vmem:[%s301] sm:$0xf]
      %v365 = vld [vmem:[%s301 + $0x4] sm:$0xf]
      %v366 = vld [vmem:[%s301 + $0x8] sm:$0xf]
      %v367 = vld [vmem:[%s301 + $0xc] sm:$0xf]
      %v368 = vunpack.c.l.bf16 %v364
      %v369 = vunpack.c.l.bf16 %v365
      %v370 = vunpack.c.l.bf16 %v366
      %v371 = vunpack.c.l.bf16 %v367
      %v372 = vlaneseq
      %v373 = vshrl.u32 %v372, 7
      %v374 = vsub.s32 0, %v373
      %v375 = vrot.slane %v340, %v374
      %377 = vbcast.lane.b32.xlu0 %v375, 256
      %v378 = vpop.permute.xlu0 %377
      %s380 = sor.u32 256, 8
      %381 = vbcast.lane.b32.xlu0 %v375, %s380
      %v382 = vpop.permute.xlu0 %381
      %s384 = sor.u32 256, 16
      %385 = vbcast.lane.b32.xlu0 %v375, %s384
      %v386 = vpop.permute.xlu0 %385
      %s388 = sor.u32 256, 24
      %389 = vbcast.lane.b32.xlu0 %v375, %s388
      %v390 = vpop.permute.xlu0 %389
      %v391 = vlaneseq
      %v392 = vshrl.u32 %v391, 7
      %v393 = vsub.s32 1, %v392
      %v394 = vrot.slane %v340, %v393
      %396 = vbcast.lane.b32.xlu0 %v394, 256
      %v397 = vpop.permute.xlu0 %396
      %s399 = sor.u32 256, 8
      %400 = vbcast.lane.b32.xlu0 %v394, %s399
      %v401 = vpop.permute.xlu0 %400
      %s403 = sor.u32 256, 16
      %404 = vbcast.lane.b32.xlu0 %v394, %s403
      %v405 = vpop.permute.xlu0 %404
      %s407 = sor.u32 256, 24
      %408 = vbcast.lane.b32.xlu0 %v394, %s407
      %v409 = vpop.permute.xlu0 %408
      %v410 = vlaneseq
      %v411 = vshrl.u32 %v410, 7
      %v412 = vsub.s32 2, %v411
      %v413 = vrot.slane %v340, %v412
      %415 = vbcast.lane.b32.xlu0 %v413, 256
      %v416 = vpop.permute.xlu0 %415
      %s418 = sor.u32 256, 8
      %419 = vbcast.lane.b32.xlu0 %v413, %s418
      %v420 = vpop.permute.xlu0 %419
      %s422 = sor.u32 256, 16
      %423 = vbcast.lane.b32.xlu0 %v413, %s422
      %v424 = vpop.permute.xlu0 %423
      %s426 = sor.u32 256, 24
      %427 = vbcast.lane.b32.xlu0 %v413, %s426
      %v428 = vpop.permute.xlu0 %427
      %v429 = vlaneseq
      %v430 = vshrl.u32 %v429, 7
      %v431 = vsub.s32 3, %v430
      %v432 = vrot.slane %v340, %v431
      %434 = vbcast.lane.b32.xlu0 %v432, 256
      %v435 = vpop.permute.xlu0 %434
      %s437 = sor.u32 256, 8
      %438 = vbcast.lane.b32.xlu0 %v432, %s437
      %v439 = vpop.permute.xlu0 %438
      %s441 = sor.u32 256, 16
      %442 = vbcast.lane.b32.xlu0 %v432, %s441
      %v443 = vpop.permute.xlu0 %442
      %s445 = sor.u32 256, 24
      %446 = vbcast.lane.b32.xlu0 %v432, %s445
      %v447 = vpop.permute.xlu0 %446
      %v448 = vlaneseq
      %v449 = vshrl.u32 %v448, 7
      %v450 = vsub.s32 4, %v449
      %v451 = vrot.slane %v340, %v450
      %453 = vbcast.lane.b32.xlu0 %v451, 256
      %v454 = vpop.permute.xlu0 %453
      %s456 = sor.u32 256, 8
      %457 = vbcast.lane.b32.xlu0 %v451, %s456
      %v458 = vpop.permute.xlu0 %457
      %s460 = sor.u32 256, 16
      %461 = vbcast.lane.b32.xlu0 %v451, %s460
      %v462 = vpop.permute.xlu0 %461
      %s464 = sor.u32 256, 24
      %465 = vbcast.lane.b32.xlu0 %v451, %s464
      %v466 = vpop.permute.xlu0 %465
      %v467 = vlaneseq
      %v468 = vshrl.u32 %v467, 7
      %v469 = vsub.s32 5, %v468
      %v470 = vrot.slane %v340, %v469
      %472 = vbcast.lane.b32.xlu0 %v470, 256
      %v473 = vpop.permute.xlu0 %472
      %s475 = sor.u32 256, 8
      %476 = vbcast.lane.b32.xlu0 %v470, %s475
      %v477 = vpop.permute.xlu0 %476
      %s479 = sor.u32 256, 16
      %480 = vbcast.lane.b32.xlu0 %v470, %s479
      %v481 = vpop.permute.xlu0 %480
      %s483 = sor.u32 256, 24
      %484 = vbcast.lane.b32.xlu0 %v470, %s483
      %v485 = vpop.permute.xlu0 %484
      %v486 = vlaneseq
      %v487 = vshrl.u32 %v486, 7
      %v488 = vsub.s32 6, %v487
      %v489 = vrot.slane %v340, %v488
      %491 = vbcast.lane.b32.xlu0 %v489, 256
      %v492 = vpop.permute.xlu0 %491
      %s494 = sor.u32 256, 8
      %495 = vbcast.lane.b32.xlu0 %v489, %s494
      %v496 = vpop.permute.xlu0 %495
      %s498 = sor.u32 256, 16
      %499 = vbcast.lane.b32.xlu0 %v489, %s498
      %v500 = vpop.permute.xlu0 %499
      %s502 = sor.u32 256, 24
      %503 = vbcast.lane.b32.xlu0 %v489, %s502
      %v504 = vpop.permute.xlu0 %503
      %v505 = vlaneseq
      %v506 = vshrl.u32 %v505, 7
      %v507 = vsub.s32 7, %v506
      %v508 = vrot.slane %v340, %v507
      %510 = vbcast.lane.b32.xlu0 %v508, 256
      %v511 = vpop.permute.xlu0 %510
      %s513 = sor.u32 256, 8
      %514 = vbcast.lane.b32.xlu0 %v508, %s513
      %v515 = vpop.permute.xlu0 %514
      %s517 = sor.u32 256, 16
      %518 = vbcast.lane.b32.xlu0 %v508, %s517
      %v519 = vpop.permute.xlu0 %518
      %s521 = sor.u32 256, 24
      %522 = vbcast.lane.b32.xlu0 %v508, %s521
      %v523 = vpop.permute.xlu0 %522
      %v524 = vlaneseq
      %v525 = vshrl.u32 %v524, 7
      %v526 = vsub.s32 0, %v525
      %v527 = vrot.slane %v341, %v526
      %529 = vbcast.lane.b32.xlu0 %v527, 256
      %v530 = vpop.permute.xlu0 %529
      %s532 = sor.u32 256, 8
      %533 = vbcast.lane.b32.xlu0 %v527, %s532
      %v534 = vpop.permute.xlu0 %533
      %s536 = sor.u32 256, 16
      %537 = vbcast.lane.b32.xlu0 %v527, %s536
      %v538 = vpop.permute.xlu0 %537
      %s540 = sor.u32 256, 24
      %541 = vbcast.lane.b32.xlu0 %v527, %s540
      %v542 = vpop.permute.xlu0 %541
      %v543 = vlaneseq
      %v544 = vshrl.u32 %v543, 7
      %v545 = vsub.s32 1, %v544
      %v546 = vrot.slane %v341, %v545
      %548 = vbcast.lane.b32.xlu0 %v546, 256
      %v549 = vpop.permute.xlu0 %548
      %s551 = sor.u32 256, 8
      %552 = vbcast.lane.b32.xlu0 %v546, %s551
      %v553 = vpop.permute.xlu0 %552
      %s555 = sor.u32 256, 16
      %556 = vbcast.lane.b32.xlu0 %v546, %s555
      %v557 = vpop.permute.xlu0 %556
      %s559 = sor.u32 256, 24
      %560 = vbcast.lane.b32.xlu0 %v546, %s559
      %v561 = vpop.permute.xlu0 %560
      %v562 = vlaneseq
      %v563 = vshrl.u32 %v562, 7
      %v564 = vsub.s32 2, %v563
      %v565 = vrot.slane %v341, %v564
      %567 = vbcast.lane.b32.xlu0 %v565, 256
      %v568 = vpop.permute.xlu0 %567
      %s570 = sor.u32 256, 8
      %571 = vbcast.lane.b32.xlu0 %v565, %s570
      %v572 = vpop.permute.xlu0 %571
      %s574 = sor.u32 256, 16
      %575 = vbcast.lane.b32.xlu0 %v565, %s574
      %v576 = vpop.permute.xlu0 %575
      %s578 = sor.u32 256, 24
      %579 = vbcast.lane.b32.xlu0 %v565, %s578
      %v580 = vpop.permute.xlu0 %579
      %v581 = vlaneseq
      %v582 = vshrl.u32 %v581, 7
      %v583 = vsub.s32 3, %v582
      %v584 = vrot.slane %v341, %v583
      %586 = vbcast.lane.b32.xlu0 %v584, 256
      %v587 = vpop.permute.xlu0 %586
      %s589 = sor.u32 256, 8
      %590 = vbcast.lane.b32.xlu0 %v584, %s589
      %v591 = vpop.permute.xlu0 %590
      %s593 = sor.u32 256, 16
      %594 = vbcast.lane.b32.xlu0 %v584, %s593
      %v595 = vpop.permute.xlu0 %594
      %s597 = sor.u32 256, 24
      %598 = vbcast.lane.b32.xlu0 %v584, %s597
      %v599 = vpop.permute.xlu0 %598
      %v600 = vlaneseq
      %v601 = vshrl.u32 %v600, 7
      %v602 = vsub.s32 4, %v601
      %v603 = vrot.slane %v341, %v602
      %605 = vbcast.lane.b32.xlu0 %v603, 256
      %v606 = vpop.permute.xlu0 %605
      %s608 = sor.u32 256, 8
      %609 = vbcast.lane.b32.xlu0 %v603, %s608
      %v610 = vpop.permute.xlu0 %609
      %s612 = sor.u32 256, 16
      %613 = vbcast.lane.b32.xlu0 %v603, %s612
      %v614 = vpop.permute.xlu0 %613
      %s616 = sor.u32 256, 24
      %617 = vbcast.lane.b32.xlu0 %v603, %s616
      %v618 = vpop.permute.xlu0 %617
      %v619 = vlaneseq
      %v620 = vshrl.u32 %v619, 7
      %v621 = vsub.s32 5, %v620
      %v622 = vrot.slane %v341, %v621
      %624 = vbcast.lane.b32.xlu0 %v622, 256
      %v625 = vpop.permute.xlu0 %624
      %s627 = sor.u32 256, 8
      %628 = vbcast.lane.b32.xlu0 %v622, %s627
      %v629 = vpop.permute.xlu0 %628
      %s631 = sor.u32 256, 16
      %632 = vbcast.lane.b32.xlu0 %v622, %s631
      %v633 = vpop.permute.xlu0 %632
      %s635 = sor.u32 256, 24
      %636 = vbcast.lane.b32.xlu0 %v622, %s635
      %v637 = vpop.permute.xlu0 %636
      %v638 = vlaneseq
      %v639 = vshrl.u32 %v638, 7
      %v640 = vsub.s32 6, %v639
      %v641 = vrot.slane %v341, %v640
      %643 = vbcast.lane.b32.xlu0 %v641, 256
      %v644 = vpop.permute.xlu0 %643
      %s646 = sor.u32 256, 8
      %647 = vbcast.lane.b32.xlu0 %v641, %s646
      %v648 = vpop.permute.xlu0 %647
      %s650 = sor.u32 256, 16
      %651 = vbcast.lane.b32.xlu0 %v641, %s650
      %v652 = vpop.permute.xlu0 %651
      %s654 = sor.u32 256, 24
      %655 = vbcast.lane.b32.xlu0 %v641, %s654
      %v656 = vpop.permute.xlu0 %655
      %v657 = vlaneseq
      %v658 = vshrl.u32 %v657, 7
      %v659 = vsub.s32 7, %v658
      %v660 = vrot.slane %v341, %v659
      %662 = vbcast.lane.b32.xlu0 %v660, 256
      %v663 = vpop.permute.xlu0 %662
      %s665 = sor.u32 256, 8
      %666 = vbcast.lane.b32.xlu0 %v660, %s665
      %v667 = vpop.permute.xlu0 %666
      %s669 = sor.u32 256, 16
      %670 = vbcast.lane.b32.xlu0 %v660, %s669
      %v671 = vpop.permute.xlu0 %670
      %s673 = sor.u32 256, 24
      %674 = vbcast.lane.b32.xlu0 %v660, %s673
      %v675 = vpop.permute.xlu0 %674
      %v676 = vlaneseq
      %v677 = vshrl.u32 %v676, 7
      %v678 = vsub.s32 0, %v677
      %v679 = vrot.slane %v342, %v678
      %681 = vbcast.lane.b32.xlu0 %v679, 256
      %v682 = vpop.permute.xlu0 %681
      %s684 = sor.u32 256, 8
      %685 = vbcast.lane.b32.xlu0 %v679, %s684
      %v686 = vpop.permute.xlu0 %685
      %s688 = sor.u32 256, 16
      %689 = vbcast.lane.b32.xlu0 %v679, %s688
      %v690 = vpop.permute.xlu0 %689
      %s692 = sor.u32 256, 24
      %693 = vbcast.lane.b32.xlu0 %v679, %s692
      %v694 = vpop.permute.xlu0 %693
      %v695 = vlaneseq
      %v696 = vshrl.u32 %v695, 7
      %v697 = vsub.s32 1, %v696
      %v698 = vrot.slane %v342, %v697
      %700 = vbcast.lane.b32.xlu0 %v698, 256
      %v701 = vpop.permute.xlu0 %700
      %s703 = sor.u32 256, 8
      %704 = vbcast.lane.b32.xlu0 %v698, %s703
      %v705 = vpop.permute.xlu0 %704
      %s707 = sor.u32 256, 16
      %708 = vbcast.lane.b32.xlu0 %v698, %s707
      %v709 = vpop.permute.xlu0 %708
      %s711 = sor.u32 256, 24
      %712 = vbcast.lane.b32.xlu0 %v698, %s711
      %v713 = vpop.permute.xlu0 %712
      %v714 = vlaneseq
      %v715 = vshrl.u32 %v714, 7
      %v716 = vsub.s32 2, %v715
      %v717 = vrot.slane %v342, %v716
      %719 = vbcast.lane.b32.xlu0 %v717, 256
      %v720 = vpop.permute.xlu0 %719
      %s722 = sor.u32 256, 8
      %723 = vbcast.lane.b32.xlu0 %v717, %s722
      %v724 = vpop.permute.xlu0 %723
      %s726 = sor.u32 256, 16
      %727 = vbcast.lane.b32.xlu0 %v717, %s726
      %v728 = vpop.permute.xlu0 %727
      %s730 = sor.u32 256, 24
      %731 = vbcast.lane.b32.xlu0 %v717, %s730
      %v732 = vpop.permute.xlu0 %731
      %v733 = vlaneseq
      %v734 = vshrl.u32 %v733, 7
      %v735 = vsub.s32 3, %v734
      %v736 = vrot.slane %v342, %v735
      %738 = vbcast.lane.b32.xlu0 %v736, 256
      %v739 = vpop.permute.xlu0 %738
      %s741 = sor.u32 256, 8
      %742 = vbcast.lane.b32.xlu0 %v736, %s741
      %v743 = vpop.permute.xlu0 %742
      %s745 = sor.u32 256, 16
      %746 = vbcast.lane.b32.xlu0 %v736, %s745
      %v747 = vpop.permute.xlu0 %746
      %s749 = sor.u32 256, 24
      %750 = vbcast.lane.b32.xlu0 %v736, %s749
      %v751 = vpop.permute.xlu0 %750
      %v752 = vlaneseq
      %v753 = vshrl.u32 %v752, 7
      %v754 = vsub.s32 4, %v753
      %v755 = vrot.slane %v342, %v754
      %757 = vbcast.lane.b32.xlu0 %v755, 256
      %v758 = vpop.permute.xlu0 %757
      %s760 = sor.u32 256, 8
      %761 = vbcast.lane.b32.xlu0 %v755, %s760
      %v762 = vpop.permute.xlu0 %761
      %s764 = sor.u32 256, 16
      %765 = vbcast.lane.b32.xlu0 %v755, %s764
      %v766 = vpop.permute.xlu0 %765
      %s768 = sor.u32 256, 24
      %769 = vbcast.lane.b32.xlu0 %v755, %s768
      %v770 = vpop.permute.xlu0 %769
      %v771 = vlaneseq
      %v772 = vshrl.u32 %v771, 7
      %v773 = vsub.s32 5, %v772
      %v774 = vrot.slane %v342, %v773
      %776 = vbcast.lane.b32.xlu0 %v774, 256
      %v777 = vpop.permute.xlu0 %776
      %s779 = sor.u32 256, 8
      %780 = vbcast.lane.b32.xlu0 %v774, %s779
      %v781 = vpop.permute.xlu0 %780
      %s783 = sor.u32 256, 16
      %784 = vbcast.lane.b32.xlu0 %v774, %s783
      %v785 = vpop.permute.xlu0 %784
      %s787 = sor.u32 256, 24
      %788 = vbcast.lane.b32.xlu0 %v774, %s787
      %v789 = vpop.permute.xlu0 %788
      %v790 = vlaneseq
      %v791 = vshrl.u32 %v790, 7
      %v792 = vsub.s32 6, %v791
      %v793 = vrot.slane %v342, %v792
      %795 = vbcast.lane.b32.xlu0 %v793, 256
      %v796 = vpop.permute.xlu0 %795
      %s798 = sor.u32 256, 8
      %799 = vbcast.lane.b32.xlu0 %v793, %s798
      %v800 = vpop.permute.xlu0 %799
      %s802 = sor.u32 256, 16
      %803 = vbcast.lane.b32.xlu0 %v793, %s802
      %v804 = vpop.permute.xlu0 %803
      %s806 = sor.u32 256, 24
      %807 = vbcast.lane.b32.xlu0 %v793, %s806
      %v808 = vpop.permute.xlu0 %807
      %v809 = vlaneseq
      %v810 = vshrl.u32 %v809, 7
      %v811 = vsub.s32 7, %v810
      %v812 = vrot.slane %v342, %v811
      %814 = vbcast.lane.b32.xlu0 %v812, 256
      %v815 = vpop.permute.xlu0 %814
      %s817 = sor.u32 256, 8
      %818 = vbcast.lane.b32.xlu0 %v812, %s817
      %v819 = vpop.permute.xlu0 %818
      %s821 = sor.u32 256, 16
      %822 = vbcast.lane.b32.xlu0 %v812, %s821
      %v823 = vpop.permute.xlu0 %822
      %s825 = sor.u32 256, 24
      %826 = vbcast.lane.b32.xlu0 %v812, %s825
      %v827 = vpop.permute.xlu0 %826
      %v828 = vlaneseq
      %v829 = vshrl.u32 %v828, 7
      %v830 = vsub.s32 0, %v829
      %v831 = vrot.slane %v343, %v830
      %833 = vbcast.lane.b32.xlu0 %v831, 256
      %v834 = vpop.permute.xlu0 %833
      %s836 = sor.u32 256, 8
      %837 = vbcast.lane.b32.xlu0 %v831, %s836
      %v838 = vpop.permute.xlu0 %837
      %s840 = sor.u32 256, 16
      %841 = vbcast.lane.b32.xlu0 %v831, %s840
      %v842 = vpop.permute.xlu0 %841
      %s844 = sor.u32 256, 24
      %845 = vbcast.lane.b32.xlu0 %v831, %s844
      %v846 = vpop.permute.xlu0 %845
      %v847 = vlaneseq
      %v848 = vshrl.u32 %v847, 7
      %v849 = vsub.s32 1, %v848
      %v850 = vrot.slane %v343, %v849
      %852 = vbcast.lane.b32.xlu0 %v850, 256
      %v853 = vpop.permute.xlu0 %852
      %s855 = sor.u32 256, 8
      %856 = vbcast.lane.b32.xlu0 %v850, %s855
      %v857 = vpop.permute.xlu0 %856
      %s859 = sor.u32 256, 16
      %860 = vbcast.lane.b32.xlu0 %v850, %s859
      %v861 = vpop.permute.xlu0 %860
      %s863 = sor.u32 256, 24
      %864 = vbcast.lane.b32.xlu0 %v850, %s863
      %v865 = vpop.permute.xlu0 %864
      %v866 = vlaneseq
      %v867 = vshrl.u32 %v866, 7
      %v868 = vsub.s32 2, %v867
      %v869 = vrot.slane %v343, %v868
      %871 = vbcast.lane.b32.xlu0 %v869, 256
      %v872 = vpop.permute.xlu0 %871
      %s874 = sor.u32 256, 8
      %875 = vbcast.lane.b32.xlu0 %v869, %s874
      %v876 = vpop.permute.xlu0 %875
      %s878 = sor.u32 256, 16
      %879 = vbcast.lane.b32.xlu0 %v869, %s878
      %v880 = vpop.permute.xlu0 %879
      %s882 = sor.u32 256, 24
      %883 = vbcast.lane.b32.xlu0 %v869, %s882
      %v884 = vpop.permute.xlu0 %883
      %v885 = vlaneseq
      %v886 = vshrl.u32 %v885, 7
      %v887 = vsub.s32 3, %v886
      %v888 = vrot.slane %v343, %v887
      %890 = vbcast.lane.b32.xlu0 %v888, 256
      %v891 = vpop.permute.xlu0 %890
      %s893 = sor.u32 256, 8
      %894 = vbcast.lane.b32.xlu0 %v888, %s893
      %v895 = vpop.permute.xlu0 %894
      %s897 = sor.u32 256, 16
      %898 = vbcast.lane.b32.xlu0 %v888, %s897
      %v899 = vpop.permute.xlu0 %898
      %s901 = sor.u32 256, 24
      %902 = vbcast.lane.b32.xlu0 %v888, %s901
      %v903 = vpop.permute.xlu0 %902
      %v904 = vlaneseq
      %v905 = vshrl.u32 %v904, 7
      %v906 = vsub.s32 4, %v905
      %v907 = vrot.slane %v343, %v906
      %909 = vbcast.lane.b32.xlu0 %v907, 256
      %v910 = vpop.permute.xlu0 %909
      %s912 = sor.u32 256, 8
      %913 = vbcast.lane.b32.xlu0 %v907, %s912
      %v914 = vpop.permute.xlu0 %913
      %s916 = sor.u32 256, 16
      %917 = vbcast.lane.b32.xlu0 %v907, %s916
      %v918 = vpop.permute.xlu0 %917
      %s920 = sor.u32 256, 24
      %921 = vbcast.lane.b32.xlu0 %v907, %s920
      %v922 = vpop.permute.xlu0 %921
      %v923 = vlaneseq
      %v924 = vshrl.u32 %v923, 7
      %v925 = vsub.s32 5, %v924
      %v926 = vrot.slane %v343, %v925
      %928 = vbcast.lane.b32.xlu0 %v926, 256
      %v929 = vpop.permute.xlu0 %928
      %s931 = sor.u32 256, 8
      %932 = vbcast.lane.b32.xlu0 %v926, %s931
      %v933 = vpop.permute.xlu0 %932
      %s935 = sor.u32 256, 16
      %936 = vbcast.lane.b32.xlu0 %v926, %s935
      %v937 = vpop.permute.xlu0 %936
      %s939 = sor.u32 256, 24
      %940 = vbcast.lane.b32.xlu0 %v926, %s939
      %v941 = vpop.permute.xlu0 %940
      %v942 = vlaneseq
      %v943 = vshrl.u32 %v942, 7
      %v944 = vsub.s32 6, %v943
      %v945 = vrot.slane %v343, %v944
      %947 = vbcast.lane.b32.xlu0 %v945, 256
      %v948 = vpop.permute.xlu0 %947
      %s950 = sor.u32 256, 8
      %951 = vbcast.lane.b32.xlu0 %v945, %s950
      %v952 = vpop.permute.xlu0 %951
      %s954 = sor.u32 256, 16
      %955 = vbcast.lane.b32.xlu0 %v945, %s954
      %v956 = vpop.permute.xlu0 %955
      %s958 = sor.u32 256, 24
      %959 = vbcast.lane.b32.xlu0 %v945, %s958
      %v960 = vpop.permute.xlu0 %959
      %v961 = vlaneseq
      %v962 = vshrl.u32 %v961, 7
      %v963 = vsub.s32 7, %v962
      %v964 = vrot.slane %v343, %v963
      %966 = vbcast.lane.b32.xlu0 %v964, 256
      %v967 = vpop.permute.xlu0 %966
      %s969 = sor.u32 256, 8
      %970 = vbcast.lane.b32.xlu0 %v964, %s969
      %v971 = vpop.permute.xlu0 %970
      %s973 = sor.u32 256, 16
      %974 = vbcast.lane.b32.xlu0 %v964, %s973
      %v975 = vpop.permute.xlu0 %974
      %s977 = sor.u32 256, 24
      %978 = vbcast.lane.b32.xlu0 %v964, %s977
      %v979 = vpop.permute.xlu0 %978
      %v980 = vadd.f32 %v368, %v378
      %v981 = vadd.f32 %v369, %v382
      %v982 = vadd.f32 %v370, %v386
      %v983 = vadd.f32 %v371, %v390
      %v984 = vadd.f32 %v368, %v397
      %v985 = vadd.f32 %v369, %v401
      %v986 = vadd.f32 %v370, %v405
      %v987 = vadd.f32 %v371, %v409
      %v988 = vadd.f32 %v368, %v416
      %v989 = vadd.f32 %v369, %v420
      %v990 = vadd.f32 %v370, %v424
      %v991 = vadd.f32 %v371, %v428
      %v992 = vadd.f32 %v368, %v435
      %v993 = vadd.f32 %v369, %v439
      %v994 = vadd.f32 %v370, %v443
      %v995 = vadd.f32 %v371, %v447
      %v996 = vadd.f32 %v368, %v454
      %v997 = vadd.f32 %v369, %v458
      %v998 = vadd.f32 %v370, %v462
      %v999 = vadd.f32 %v371, %v466
      %v1000 = vadd.f32 %v368, %v473
      %v1001 = vadd.f32 %v369, %v477
      %v1002 = vadd.f32 %v370, %v481
      %v1003 = vadd.f32 %v371, %v485
      %v1004 = vadd.f32 %v368, %v492
      %v1005 = vadd.f32 %v369, %v496
      %v1006 = vadd.f32 %v370, %v500
      %v1007 = vadd.f32 %v371, %v504
      %v1008 = vadd.f32 %v368, %v511
      %v1009 = vadd.f32 %v369, %v515
      %v1010 = vadd.f32 %v370, %v519
      %v1011 = vadd.f32 %v371, %v523
      %v1012 = vadd.f32 %v368, %v530
      %v1013 = vadd.f32 %v369, %v534
      %v1014 = vadd.f32 %v370, %v538
      %v1015 = vadd.f32 %v371, %v542
      %v1016 = vadd.f32 %v368, %v549
      %v1017 = vadd.f32 %v369, %v553
      %v1018 = vadd.f32 %v370, %v557
      %v1019 = vadd.f32 %v371, %v561
      %v1020 = vadd.f32 %v368, %v568
      %v1021 = vadd.f32 %v369, %v572
      %v1022 = vadd.f32 %v370, %v576
      %v1023 = vadd.f32 %v371, %v580
      %v1024 = vadd.f32 %v368, %v587
      %v1025 = vadd.f32 %v369, %v591
      %v1026 = vadd.f32 %v370, %v595
      %v1027 = vadd.f32 %v371, %v599
      %v1028 = vadd.f32 %v368, %v606
      %v1029 = vadd.f32 %v369, %v610
      %v1030 = vadd.f32 %v370, %v614
      %v1031 = vadd.f32 %v371, %v618
      %v1032 = vadd.f32 %v368, %v625
      %v1033 = vadd.f32 %v369, %v629
      %v1034 = vadd.f32 %v370, %v633
      %v1035 = vadd.f32 %v371, %v637
      %v1036 = vadd.f32 %v368, %v644
      %v1037 = vadd.f32 %v369, %v648
      %v1038 = vadd.f32 %v370, %v652
      %v1039 = vadd.f32 %v371, %v656
      %v1040 = vadd.f32 %v368, %v663
      %v1041 = vadd.f32 %v369, %v667
      %v1042 = vadd.f32 %v370, %v671
      %v1043 = vadd.f32 %v371, %v675
      %v1044 = vadd.f32 %v368, %v682
      %v1045 = vadd.f32 %v369, %v686
      %v1046 = vadd.f32 %v370, %v690
      %v1047 = vadd.f32 %v371, %v694
      %v1048 = vadd.f32 %v368, %v701
      %v1049 = vadd.f32 %v369, %v705
      %v1050 = vadd.f32 %v370, %v709
      %v1051 = vadd.f32 %v371, %v713
      %v1052 = vadd.f32 %v368, %v720
      %v1053 = vadd.f32 %v369, %v724
      %v1054 = vadd.f32 %v370, %v728
      %v1055 = vadd.f32 %v371, %v732
      %v1056 = vadd.f32 %v368, %v739
      %v1057 = vadd.f32 %v369, %v743
      %v1058 = vadd.f32 %v370, %v747
      %v1059 = vadd.f32 %v371, %v751
      %v1060 = vadd.f32 %v368, %v758
      %v1061 = vadd.f32 %v369, %v762
      %v1062 = vadd.f32 %v370, %v766
      %v1063 = vadd.f32 %v371, %v770
      %v1064 = vadd.f32 %v368, %v777
      %v1065 = vadd.f32 %v369, %v781
      %v1066 = vadd.f32 %v370, %v785
      %v1067 = vadd.f32 %v371, %v789
      %v1068 = vadd.f32 %v368, %v796
      %v1069 = vadd.f32 %v369, %v800
      %v1070 = vadd.f32 %v370, %v804
      %v1071 = vadd.f32 %v371, %v808
      %v1072 = vadd.f32 %v368, %v815
      %v1073 = vadd.f32 %v369, %v819
      %v1074 = vadd.f32 %v370, %v823
      %v1075 = vadd.f32 %v371, %v827
      %v1076 = vadd.f32 %v368, %v834
      %v1077 = vadd.f32 %v369, %v838
      %v1078 = vadd.f32 %v370, %v842
      %v1079 = vadd.f32 %v371, %v846
      %v1080 = vadd.f32 %v368, %v853
      %v1081 = vadd.f32 %v369, %v857
      %v1082 = vadd.f32 %v370, %v861
      %v1083 = vadd.f32 %v371, %v865
      %v1084 = vadd.f32 %v368, %v872
      %v1085 = vadd.f32 %v369, %v876
      %v1086 = vadd.f32 %v370, %v880
      %v1087 = vadd.f32 %v371, %v884
      %v1088 = vadd.f32 %v368, %v891
      %v1089 = vadd.f32 %v369, %v895
      %v1090 = vadd.f32 %v370, %v899
      %v1091 = vadd.f32 %v371, %v903
      %v1092 = vadd.f32 %v368, %v910
      %v1093 = vadd.f32 %v369, %v914
      %v1094 = vadd.f32 %v370, %v918
      %v1095 = vadd.f32 %v371, %v922
      %v1096 = vadd.f32 %v368, %v929
      %v1097 = vadd.f32 %v369, %v933
      %v1098 = vadd.f32 %v370, %v937
      %v1099 = vadd.f32 %v371, %v941
      %v1100 = vadd.f32 %v368, %v948
      %v1101 = vadd.f32 %v369, %v952
      %v1102 = vadd.f32 %v370, %v956
      %v1103 = vadd.f32 %v371, %v960
      %v1104 = vadd.f32 %v368, %v967
      %v1105 = vadd.f32 %v369, %v971
      %v1106 = vadd.f32 %v370, %v975
      %v1107 = vadd.f32 %v371, %v979
      %v1108 = vmax.f32 %v980, 0.0
      %v1109 = vmax.f32 %v981, 0.0
      %v1110 = vmax.f32 %v982, 0.0
      %v1111 = vmax.f32 %v983, 0.0
      %v1112 = vmax.f32 %v984, 0.0
      %v1113 = vmax.f32 %v985, 0.0
      %v1114 = vmax.f32 %v986, 0.0
      %v1115 = vmax.f32 %v987, 0.0
      %v1116 = vmax.f32 %v988, 0.0
      %v1117 = vmax.f32 %v989, 0.0
      %v1118 = vmax.f32 %v990, 0.0
      %v1119 = vmax.f32 %v991, 0.0
      %v1120 = vmax.f32 %v992, 0.0
      %v1121 = vmax.f32 %v993, 0.0
      %v1122 = vmax.f32 %v994, 0.0
      %v1123 = vmax.f32 %v995, 0.0
      %v1124 = vmax.f32 %v996, 0.0
      %v1125 = vmax.f32 %v997, 0.0
      %v1126 = vmax.f32 %v998, 0.0
      %v1127 = vmax.f32 %v999, 0.0
      %v1128 = vmax.f32 %v1000, 0.0
      %v1129 = vmax.f32 %v1001, 0.0
      %v1130 = vmax.f32 %v1002, 0.0
      %v1131 = vmax.f32 %v1003, 0.0
      %v1132 = vmax.f32 %v1004, 0.0
      %v1133 = vmax.f32 %v1005, 0.0
      %v1134 = vmax.f32 %v1006, 0.0
      %v1135 = vmax.f32 %v1007, 0.0
      %v1136 = vmax.f32 %v1008, 0.0
      %v1137 = vmax.f32 %v1009, 0.0
      %v1138 = vmax.f32 %v1010, 0.0
      %v1139 = vmax.f32 %v1011, 0.0
      %v1140 = vmax.f32 %v1012, 0.0
      %v1141 = vmax.f32 %v1013, 0.0
      %v1142 = vmax.f32 %v1014, 0.0
      %v1143 = vmax.f32 %v1015, 0.0
      %v1144 = vmax.f32 %v1016, 0.0
      %v1145 = vmax.f32 %v1017, 0.0
      %v1146 = vmax.f32 %v1018, 0.0
      %v1147 = vmax.f32 %v1019, 0.0
      %v1148 = vmax.f32 %v1020, 0.0
      %v1149 = vmax.f32 %v1021, 0.0
      %v1150 = vmax.f32 %v1022, 0.0
      %v1151 = vmax.f32 %v1023, 0.0
      %v1152 = vmax.f32 %v1024, 0.0
      %v1153 = vmax.f32 %v1025, 0.0
      %v1154 = vmax.f32 %v1026, 0.0
      %v1155 = vmax.f32 %v1027, 0.0
      %v1156 = vmax.f32 %v1028, 0.0
      %v1157 = vmax.f32 %v1029, 0.0
      %v1158 = vmax.f32 %v1030, 0.0
      %v1159 = vmax.f32 %v1031, 0.0
      %v1160 = vmax.f32 %v1032, 0.0
      %v1161 = vmax.f32 %v1033, 0.0
      %v1162 = vmax.f32 %v1034, 0.0
      %v1163 = vmax.f32 %v1035, 0.0
      %v1164 = vmax.f32 %v1036, 0.0
      %v1165 = vmax.f32 %v1037, 0.0
      %v1166 = vmax.f32 %v1038, 0.0
      %v1167 = vmax.f32 %v1039, 0.0
      %v1168 = vmax.f32 %v1040, 0.0
      %v1169 = vmax.f32 %v1041, 0.0
      %v1170 = vmax.f32 %v1042, 0.0
      %v1171 = vmax.f32 %v1043, 0.0
      %v1172 = vmax.f32 %v1044, 0.0
      %v1173 = vmax.f32 %v1045, 0.0
      %v1174 = vmax.f32 %v1046, 0.0
      %v1175 = vmax.f32 %v1047, 0.0
      %v1176 = vmax.f32 %v1048, 0.0
      %v1177 = vmax.f32 %v1049, 0.0
      %v1178 = vmax.f32 %v1050, 0.0
      %v1179 = vmax.f32 %v1051, 0.0
      %v1180 = vmax.f32 %v1052, 0.0
      %v1181 = vmax.f32 %v1053, 0.0
      %v1182 = vmax.f32 %v1054, 0.0
      %v1183 = vmax.f32 %v1055, 0.0
      %v1184 = vmax.f32 %v1056, 0.0
      %v1185 = vmax.f32 %v1057, 0.0
      %v1186 = vmax.f32 %v1058, 0.0
      %v1187 = vmax.f32 %v1059, 0.0
      %v1188 = vmax.f32 %v1060, 0.0
      %v1189 = vmax.f32 %v1061, 0.0
      %v1190 = vmax.f32 %v1062, 0.0
      %v1191 = vmax.f32 %v1063, 0.0
      %v1192 = vmax.f32 %v1064, 0.0
      %v1193 = vmax.f32 %v1065, 0.0
      %v1194 = vmax.f32 %v1066, 0.0
      %v1195 = vmax.f32 %v1067, 0.0
      %v1196 = vmax.f32 %v1068, 0.0
      %v1197 = vmax.f32 %v1069, 0.0
      %v1198 = vmax.f32 %v1070, 0.0
      %v1199 = vmax.f32 %v1071, 0.0
      %v1200 = vmax.f32 %v1072, 0.0
      %v1201 = vmax.f32 %v1073, 0.0
      %v1202 = vmax.f32 %v1074, 0.0
      %v1203 = vmax.f32 %v1075, 0.0
      %v1204 = vmax.f32 %v1076, 0.0
      %v1205 = vmax.f32 %v1077, 0.0
      %v1206 = vmax.f32 %v1078, 0.0
      %v1207 = vmax.f32 %v1079, 0.0
      %v1208 = vmax.f32 %v1080, 0.0
      %v1209 = vmax.f32 %v1081, 0.0
      %v1210 = vmax.f32 %v1082, 0.0
      %v1211 = vmax.f32 %v1083, 0.0
      %v1212 = vmax.f32 %v1084, 0.0
      %v1213 = vmax.f32 %v1085, 0.0
      %v1214 = vmax.f32 %v1086, 0.0
      %v1215 = vmax.f32 %v1087, 0.0
      %v1216 = vmax.f32 %v1088, 0.0
      %v1217 = vmax.f32 %v1089, 0.0
      %v1218 = vmax.f32 %v1090, 0.0
      %v1219 = vmax.f32 %v1091, 0.0
      %v1220 = vmax.f32 %v1092, 0.0
      %v1221 = vmax.f32 %v1093, 0.0
      %v1222 = vmax.f32 %v1094, 0.0
      %v1223 = vmax.f32 %v1095, 0.0
      %v1224 = vmax.f32 %v1096, 0.0
      %v1225 = vmax.f32 %v1097, 0.0
      %v1226 = vmax.f32 %v1098, 0.0
      %v1227 = vmax.f32 %v1099, 0.0
      %v1228 = vmax.f32 %v1100, 0.0
      %v1229 = vmax.f32 %v1101, 0.0
      %v1230 = vmax.f32 %v1102, 0.0
      %v1231 = vmax.f32 %v1103, 0.0
      %v1232 = vmax.f32 %v1104, 0.0
      %v1233 = vmax.f32 %v1105, 0.0
      %v1234 = vmax.f32 %v1106, 0.0
      %v1235 = vmax.f32 %v1107, 0.0
      %v1236 = vmul.f32 %v1108, %v351
      %v1237 = vmul.f32 %v1109, %v355
      %v1238 = vmul.f32 %v1110, %v359
      %v1239 = vmul.f32 %v1111, %v363
      %v1240 = vmul.f32 %v1112, %v351
      %v1241 = vmul.f32 %v1113, %v355
      %v1242 = vmul.f32 %v1114, %v359
      %v1243 = vmul.f32 %v1115, %v363
      %v1244 = vmul.f32 %v1116, %v351
      %v1245 = vmul.f32 %v1117, %v355
      %v1246 = vmul.f32 %v1118, %v359
      %v1247 = vmul.f32 %v1119, %v363
      %v1248 = vmul.f32 %v1120, %v351
      %v1249 = vmul.f32 %v1121, %v355
      %v1250 = vmul.f32 %v1122, %v359
      %v1251 = vmul.f32 %v1123, %v363
      %v1252 = vmul.f32 %v1124, %v351
      %v1253 = vmul.f32 %v1125, %v355
      %v1254 = vmul.f32 %v1126, %v359
      %v1255 = vmul.f32 %v1127, %v363
      %v1256 = vmul.f32 %v1128, %v351
      %v1257 = vmul.f32 %v1129, %v355
      %v1258 = vmul.f32 %v1130, %v359
      %v1259 = vmul.f32 %v1131, %v363
      %v1260 = vmul.f32 %v1132, %v351
      %v1261 = vmul.f32 %v1133, %v355
      %v1262 = vmul.f32 %v1134, %v359
      %v1263 = vmul.f32 %v1135, %v363
      %v1264 = vmul.f32 %v1136, %v351
      %v1265 = vmul.f32 %v1137, %v355
      %v1266 = vmul.f32 %v1138, %v359
      %v1267 = vmul.f32 %v1139, %v363
      %v1268 = vmul.f32 %v1140, %v351
      %v1269 = vmul.f32 %v1141, %v355
      %v1270 = vmul.f32 %v1142, %v359
      %v1271 = vmul.f32 %v1143, %v363
      %v1272 = vmul.f32 %v1144, %v351
      %v1273 = vmul.f32 %v1145, %v355
      %v1274 = vmul.f32 %v1146, %v359
      %v1275 = vmul.f32 %v1147, %v363
      %v1276 = vmul.f32 %v1148, %v351
      %v1277 = vmul.f32 %v1149, %v355
      %v1278 = vmul.f32 %v1150, %v359
      %v1279 = vmul.f32 %v1151, %v363
      %v1280 = vmul.f32 %v1152, %v351
      %v1281 = vmul.f32 %v1153, %v355
      %v1282 = vmul.f32 %v1154, %v359
      %v1283 = vmul.f32 %v1155, %v363
      %v1284 = vmul.f32 %v1156, %v351
      %v1285 = vmul.f32 %v1157, %v355
      %v1286 = vmul.f32 %v1158, %v359
      %v1287 = vmul.f32 %v1159, %v363
      %v1288 = vmul.f32 %v1160, %v351
      %v1289 = vmul.f32 %v1161, %v355
      %v1290 = vmul.f32 %v1162, %v359
      %v1291 = vmul.f32 %v1163, %v363
      %v1292 = vmul.f32 %v1164, %v351
      %v1293 = vmul.f32 %v1165, %v355
      %v1294 = vmul.f32 %v1166, %v359
      %v1295 = vmul.f32 %v1167, %v363
      %v1296 = vmul.f32 %v1168, %v351
      %v1297 = vmul.f32 %v1169, %v355
      %v1298 = vmul.f32 %v1170, %v359
      %v1299 = vmul.f32 %v1171, %v363
      %v1300 = vmul.f32 %v1172, %v351
      %v1301 = vmul.f32 %v1173, %v355
      %v1302 = vmul.f32 %v1174, %v359
      %v1303 = vmul.f32 %v1175, %v363
      %v1304 = vmul.f32 %v1176, %v351
      %v1305 = vmul.f32 %v1177, %v355
      %v1306 = vmul.f32 %v1178, %v359
      %v1307 = vmul.f32 %v1179, %v363
      %v1308 = vmul.f32 %v1180, %v351
      %v1309 = vmul.f32 %v1181, %v355
      %v1310 = vmul.f32 %v1182, %v359
      %v1311 = vmul.f32 %v1183, %v363
      %v1312 = vmul.f32 %v1184, %v351
      %v1313 = vmul.f32 %v1185, %v355
      %v1314 = vmul.f32 %v1186, %v359
      %v1315 = vmul.f32 %v1187, %v363
      %v1316 = vmul.f32 %v1188, %v351
      %v1317 = vmul.f32 %v1189, %v355
      %v1318 = vmul.f32 %v1190, %v359
      %v1319 = vmul.f32 %v1191, %v363
      %v1320 = vmul.f32 %v1192, %v351
      %v1321 = vmul.f32 %v1193, %v355
      %v1322 = vmul.f32 %v1194, %v359
      %v1323 = vmul.f32 %v1195, %v363
      %v1324 = vmul.f32 %v1196, %v351
      %v1325 = vmul.f32 %v1197, %v355
      %v1326 = vmul.f32 %v1198, %v359
      %v1327 = vmul.f32 %v1199, %v363
      %v1328 = vmul.f32 %v1200, %v351
      %v1329 = vmul.f32 %v1201, %v355
      %v1330 = vmul.f32 %v1202, %v359
      %v1331 = vmul.f32 %v1203, %v363
      %v1332 = vmul.f32 %v1204, %v351
      %v1333 = vmul.f32 %v1205, %v355
      %v1334 = vmul.f32 %v1206, %v359
      %v1335 = vmul.f32 %v1207, %v363
      %v1336 = vmul.f32 %v1208, %v351
      %v1337 = vmul.f32 %v1209, %v355
      %v1338 = vmul.f32 %v1210, %v359
      %v1339 = vmul.f32 %v1211, %v363
      %v1340 = vmul.f32 %v1212, %v351
      %v1341 = vmul.f32 %v1213, %v355
      %v1342 = vmul.f32 %v1214, %v359
      %v1343 = vmul.f32 %v1215, %v363
      %v1344 = vmul.f32 %v1216, %v351
      %v1345 = vmul.f32 %v1217, %v355
      %v1346 = vmul.f32 %v1218, %v359
      %v1347 = vmul.f32 %v1219, %v363
      %v1348 = vmul.f32 %v1220, %v351
      %v1349 = vmul.f32 %v1221, %v355
      %v1350 = vmul.f32 %v1222, %v359
      %v1351 = vmul.f32 %v1223, %v363
      %v1352 = vmul.f32 %v1224, %v351
      %v1353 = vmul.f32 %v1225, %v355
      %v1354 = vmul.f32 %v1226, %v359
      %v1355 = vmul.f32 %v1227, %v363
      %v1356 = vmul.f32 %v1228, %v351
      %v1357 = vmul.f32 %v1229, %v355
      %v1358 = vmul.f32 %v1230, %v359
      %v1359 = vmul.f32 %v1231, %v363
      %v1360 = vmul.f32 %v1232, %v351
      %v1361 = vmul.f32 %v1233, %v355
      %v1362 = vmul.f32 %v1234, %v359
      %v1363 = vmul.f32 %v1235, %v363
      %vm1364 = vcmask 261120
      %v1365 = vsel %vm1364, %v1236, 0.0
      %v1366 = vsel %vm1364, %v1237, 0.0
      %v1367 = vadd.f32 %v1365, %v1366
      %v1368 = vsel %vm1364, %v1238, 0.0
      %v1369 = vadd.f32 %v1367, %v1368
      %v1370 = vsel %vm1364, %v1239, 0.0
      %v1371 = vadd.f32 %v1369, %v1370
      %v1372 = vrot.slane %v1371, 4
      %v1373 = vadd.f32 %v1371, %v1372
      %v1374 = vrot.slane %v1373, 2
      %v1375 = vadd.f32 %v1373, %v1374
      %v1376 = vrot.slane %v1375, 1
      %v1377 = vadd.f32 %v1375, %v1376
      %v1378 = vsel %vm1364, %v1240, 0.0
      %v1379 = vsel %vm1364, %v1241, 0.0
      %v1380 = vadd.f32 %v1378, %v1379
      %v1381 = vsel %vm1364, %v1242, 0.0
      %v1382 = vadd.f32 %v1380, %v1381
      %v1383 = vsel %vm1364, %v1243, 0.0
      %v1384 = vadd.f32 %v1382, %v1383
      %v1385 = vrot.slane %v1384, 4
      %v1386 = vadd.f32 %v1384, %v1385
      %v1387 = vrot.slane %v1386, 2
      %v1388 = vadd.f32 %v1386, %v1387
      %v1389 = vrot.slane %v1388, 1
      %v1390 = vadd.f32 %v1388, %v1389
      %v1391 = vsel %vm1364, %v1244, 0.0
      %v1392 = vsel %vm1364, %v1245, 0.0
      %v1393 = vadd.f32 %v1391, %v1392
      %v1394 = vsel %vm1364, %v1246, 0.0
      %v1395 = vadd.f32 %v1393, %v1394
      %v1396 = vsel %vm1364, %v1247, 0.0
      %v1397 = vadd.f32 %v1395, %v1396
      %v1398 = vrot.slane %v1397, 4
      %v1399 = vadd.f32 %v1397, %v1398
      %v1400 = vrot.slane %v1399, 2
      %v1401 = vadd.f32 %v1399, %v1400
      %v1402 = vrot.slane %v1401, 1
      %v1403 = vadd.f32 %v1401, %v1402
      %v1404 = vsel %vm1364, %v1248, 0.0
      %v1405 = vsel %vm1364, %v1249, 0.0
      %v1406 = vadd.f32 %v1404, %v1405
      %v1407 = vsel %vm1364, %v1250, 0.0
      %v1408 = vadd.f32 %v1406, %v1407
      %v1409 = vsel %vm1364, %v1251, 0.0
      %v1410 = vadd.f32 %v1408, %v1409
      %v1411 = vrot.slane %v1410, 4
      %v1412 = vadd.f32 %v1410, %v1411
      %v1413 = vrot.slane %v1412, 2
      %v1414 = vadd.f32 %v1412, %v1413
      %v1415 = vrot.slane %v1414, 1
      %v1416 = vadd.f32 %v1414, %v1415
      %v1417 = vsel %vm1364, %v1252, 0.0
      %v1418 = vsel %vm1364, %v1253, 0.0
      %v1419 = vadd.f32 %v1417, %v1418
      %v1420 = vsel %vm1364, %v1254, 0.0
      %v1421 = vadd.f32 %v1419, %v1420
      %v1422 = vsel %vm1364, %v1255, 0.0
      %v1423 = vadd.f32 %v1421, %v1422
      %v1424 = vrot.slane %v1423, 4
      %v1425 = vadd.f32 %v1423, %v1424
      %v1426 = vrot.slane %v1425, 2
      %v1427 = vadd.f32 %v1425, %v1426
      %v1428 = vrot.slane %v1427, 1
      %v1429 = vadd.f32 %v1427, %v1428
      %v1430 = vsel %vm1364, %v1256, 0.0
      %v1431 = vsel %vm1364, %v1257, 0.0
      %v1432 = vadd.f32 %v1430, %v1431
      %v1433 = vsel %vm1364, %v1258, 0.0
      %v1434 = vadd.f32 %v1432, %v1433
      %v1435 = vsel %vm1364, %v1259, 0.0
      %v1436 = vadd.f32 %v1434, %v1435
      %v1437 = vrot.slane %v1436, 4
      %v1438 = vadd.f32 %v1436, %v1437
      %v1439 = vrot.slane %v1438, 2
      %v1440 = vadd.f32 %v1438, %v1439
      %v1441 = vrot.slane %v1440, 1
      %v1442 = vadd.f32 %v1440, %v1441
      %v1443 = vsel %vm1364, %v1260, 0.0
      %v1444 = vsel %vm1364, %v1261, 0.0
      %v1445 = vadd.f32 %v1443, %v1444
      %v1446 = vsel %vm1364, %v1262, 0.0
      %v1447 = vadd.f32 %v1445, %v1446
      %v1448 = vsel %vm1364, %v1263, 0.0
      %v1449 = vadd.f32 %v1447, %v1448
      %v1450 = vrot.slane %v1449, 4
      %v1451 = vadd.f32 %v1449, %v1450
      %v1452 = vrot.slane %v1451, 2
      %v1453 = vadd.f32 %v1451, %v1452
      %v1454 = vrot.slane %v1453, 1
      %v1455 = vadd.f32 %v1453, %v1454
      %v1456 = vsel %vm1364, %v1264, 0.0
      %v1457 = vsel %vm1364, %v1265, 0.0
      %v1458 = vadd.f32 %v1456, %v1457
      %v1459 = vsel %vm1364, %v1266, 0.0
      %v1460 = vadd.f32 %v1458, %v1459
      %v1461 = vsel %vm1364, %v1267, 0.0
      %v1462 = vadd.f32 %v1460, %v1461
      %v1463 = vrot.slane %v1462, 4
      %v1464 = vadd.f32 %v1462, %v1463
      %v1465 = vrot.slane %v1464, 2
      %v1466 = vadd.f32 %v1464, %v1465
      %v1467 = vrot.slane %v1466, 1
      %v1468 = vadd.f32 %v1466, %v1467
      %v1469 = vsel %vm1364, %v1268, 0.0
      %v1470 = vsel %vm1364, %v1269, 0.0
      %v1471 = vadd.f32 %v1469, %v1470
      %v1472 = vsel %vm1364, %v1270, 0.0
      %v1473 = vadd.f32 %v1471, %v1472
      %v1474 = vsel %vm1364, %v1271, 0.0
      %v1475 = vadd.f32 %v1473, %v1474
      %v1476 = vrot.slane %v1475, 4
      %v1477 = vadd.f32 %v1475, %v1476
      %v1478 = vrot.slane %v1477, 2
      %v1479 = vadd.f32 %v1477, %v1478
      %v1480 = vrot.slane %v1479, 1
      %v1481 = vadd.f32 %v1479, %v1480
      %v1482 = vsel %vm1364, %v1272, 0.0
      %v1483 = vsel %vm1364, %v1273, 0.0
      %v1484 = vadd.f32 %v1482, %v1483
      %v1485 = vsel %vm1364, %v1274, 0.0
      %v1486 = vadd.f32 %v1484, %v1485
      %v1487 = vsel %vm1364, %v1275, 0.0
      %v1488 = vadd.f32 %v1486, %v1487
      %v1489 = vrot.slane %v1488, 4
      %v1490 = vadd.f32 %v1488, %v1489
      %v1491 = vrot.slane %v1490, 2
      %v1492 = vadd.f32 %v1490, %v1491
      %v1493 = vrot.slane %v1492, 1
      %v1494 = vadd.f32 %v1492, %v1493
      %v1495 = vsel %vm1364, %v1276, 0.0
      %v1496 = vsel %vm1364, %v1277, 0.0
      %v1497 = vadd.f32 %v1495, %v1496
      %v1498 = vsel %vm1364, %v1278, 0.0
      %v1499 = vadd.f32 %v1497, %v1498
      %v1500 = vsel %vm1364, %v1279, 0.0
      %v1501 = vadd.f32 %v1499, %v1500
      %v1502 = vrot.slane %v1501, 4
      %v1503 = vadd.f32 %v1501, %v1502
      %v1504 = vrot.slane %v1503, 2
      %v1505 = vadd.f32 %v1503, %v1504
      %v1506 = vrot.slane %v1505, 1
      %v1507 = vadd.f32 %v1505, %v1506
      %v1508 = vsel %vm1364, %v1280, 0.0
      %v1509 = vsel %vm1364, %v1281, 0.0
      %v1510 = vadd.f32 %v1508, %v1509
      %v1511 = vsel %vm1364, %v1282, 0.0
      %v1512 = vadd.f32 %v1510, %v1511
      %v1513 = vsel %vm1364, %v1283, 0.0
      %v1514 = vadd.f32 %v1512, %v1513
      %v1515 = vrot.slane %v1514, 4
      %v1516 = vadd.f32 %v1514, %v1515
      %v1517 = vrot.slane %v1516, 2
      %v1518 = vadd.f32 %v1516, %v1517
      %v1519 = vrot.slane %v1518, 1
      %v1520 = vadd.f32 %v1518, %v1519
      %v1521 = vsel %vm1364, %v1284, 0.0
      %v1522 = vsel %vm1364, %v1285, 0.0
      %v1523 = vadd.f32 %v1521, %v1522
      %v1524 = vsel %vm1364, %v1286, 0.0
      %v1525 = vadd.f32 %v1523, %v1524
      %v1526 = vsel %vm1364, %v1287, 0.0
      %v1527 = vadd.f32 %v1525, %v1526
      %v1528 = vrot.slane %v1527, 4
      %v1529 = vadd.f32 %v1527, %v1528
      %v1530 = vrot.slane %v1529, 2
      %v1531 = vadd.f32 %v1529, %v1530
      %v1532 = vrot.slane %v1531, 1
      %v1533 = vadd.f32 %v1531, %v1532
      %v1534 = vsel %vm1364, %v1288, 0.0
      %v1535 = vsel %vm1364, %v1289, 0.0
      %v1536 = vadd.f32 %v1534, %v1535
      %v1537 = vsel %vm1364, %v1290, 0.0
      %v1538 = vadd.f32 %v1536, %v1537
      %v1539 = vsel %vm1364, %v1291, 0.0
      %v1540 = vadd.f32 %v1538, %v1539
      %v1541 = vrot.slane %v1540, 4
      %v1542 = vadd.f32 %v1540, %v1541
      %v1543 = vrot.slane %v1542, 2
      %v1544 = vadd.f32 %v1542, %v1543
      %v1545 = vrot.slane %v1544, 1
      %v1546 = vadd.f32 %v1544, %v1545
      %v1547 = vsel %vm1364, %v1292, 0.0
      %v1548 = vsel %vm1364, %v1293, 0.0
      %v1549 = vadd.f32 %v1547, %v1548
      %v1550 = vsel %vm1364, %v1294, 0.0
      %v1551 = vadd.f32 %v1549, %v1550
      %v1552 = vsel %vm1364, %v1295, 0.0
      %v1553 = vadd.f32 %v1551, %v1552
      %v1554 = vrot.slane %v1553, 4
      %v1555 = vadd.f32 %v1553, %v1554
      %v1556 = vrot.slane %v1555, 2
      %v1557 = vadd.f32 %v1555, %v1556
      %v1558 = vrot.slane %v1557, 1
      %v1559 = vadd.f32 %v1557, %v1558
      %v1560 = vsel %vm1364, %v1296, 0.0
      %v1561 = vsel %vm1364, %v1297, 0.0
      %v1562 = vadd.f32 %v1560, %v1561
      %v1563 = vsel %vm1364, %v1298, 0.0
      %v1564 = vadd.f32 %v1562, %v1563
      %v1565 = vsel %vm1364, %v1299, 0.0
      %v1566 = vadd.f32 %v1564, %v1565
      %v1567 = vrot.slane %v1566, 4
      %v1568 = vadd.f32 %v1566, %v1567
      %v1569 = vrot.slane %v1568, 2
      %v1570 = vadd.f32 %v1568, %v1569
      %v1571 = vrot.slane %v1570, 1
      %v1572 = vadd.f32 %v1570, %v1571
      %v1573 = vsel %vm1364, %v1300, 0.0
      %v1574 = vsel %vm1364, %v1301, 0.0
      %v1575 = vadd.f32 %v1573, %v1574
      %v1576 = vsel %vm1364, %v1302, 0.0
      %v1577 = vadd.f32 %v1575, %v1576
      %v1578 = vsel %vm1364, %v1303, 0.0
      %v1579 = vadd.f32 %v1577, %v1578
      %v1580 = vrot.slane %v1579, 4
      %v1581 = vadd.f32 %v1579, %v1580
      %v1582 = vrot.slane %v1581, 2
      %v1583 = vadd.f32 %v1581, %v1582
      %v1584 = vrot.slane %v1583, 1
      %v1585 = vadd.f32 %v1583, %v1584
      %v1586 = vsel %vm1364, %v1304, 0.0
      %v1587 = vsel %vm1364, %v1305, 0.0
      %v1588 = vadd.f32 %v1586, %v1587
      %v1589 = vsel %vm1364, %v1306, 0.0
      %v1590 = vadd.f32 %v1588, %v1589
      %v1591 = vsel %vm1364, %v1307, 0.0
      %v1592 = vadd.f32 %v1590, %v1591
      %v1593 = vrot.slane %v1592, 4
      %v1594 = vadd.f32 %v1592, %v1593
      %v1595 = vrot.slane %v1594, 2
      %v1596 = vadd.f32 %v1594, %v1595
      %v1597 = vrot.slane %v1596, 1
      %v1598 = vadd.f32 %v1596, %v1597
      %v1599 = vsel %vm1364, %v1308, 0.0
      %v1600 = vsel %vm1364, %v1309, 0.0
      %v1601 = vadd.f32 %v1599, %v1600
      %v1602 = vsel %vm1364, %v1310, 0.0
      %v1603 = vadd.f32 %v1601, %v1602
      %v1604 = vsel %vm1364, %v1311, 0.0
      %v1605 = vadd.f32 %v1603, %v1604
      %v1606 = vrot.slane %v1605, 4
      %v1607 = vadd.f32 %v1605, %v1606
      %v1608 = vrot.slane %v1607, 2
      %v1609 = vadd.f32 %v1607, %v1608
      %v1610 = vrot.slane %v1609, 1
      %v1611 = vadd.f32 %v1609, %v1610
      %v1612 = vsel %vm1364, %v1312, 0.0
      %v1613 = vsel %vm1364, %v1313, 0.0
      %v1614 = vadd.f32 %v1612, %v1613
      %v1615 = vsel %vm1364, %v1314, 0.0
      %v1616 = vadd.f32 %v1614, %v1615
      %v1617 = vsel %vm1364, %v1315, 0.0
      %v1618 = vadd.f32 %v1616, %v1617
      %v1619 = vrot.slane %v1618, 4
      %v1620 = vadd.f32 %v1618, %v1619
      %v1621 = vrot.slane %v1620, 2
      %v1622 = vadd.f32 %v1620, %v1621
      %v1623 = vrot.slane %v1622, 1
      %v1624 = vadd.f32 %v1622, %v1623
      %v1625 = vsel %vm1364, %v1316, 0.0
      %v1626 = vsel %vm1364, %v1317, 0.0
      %v1627 = vadd.f32 %v1625, %v1626
      %v1628 = vsel %vm1364, %v1318, 0.0
      %v1629 = vadd.f32 %v1627, %v1628
      %v1630 = vsel %vm1364, %v1319, 0.0
      %v1631 = vadd.f32 %v1629, %v1630
      %v1632 = vrot.slane %v1631, 4
      %v1633 = vadd.f32 %v1631, %v1632
      %v1634 = vrot.slane %v1633, 2
      %v1635 = vadd.f32 %v1633, %v1634
      %v1636 = vrot.slane %v1635, 1
      %v1637 = vadd.f32 %v1635, %v1636
      %v1638 = vsel %vm1364, %v1320, 0.0
      %v1639 = vsel %vm1364, %v1321, 0.0
      %v1640 = vadd.f32 %v1638, %v1639
      %v1641 = vsel %vm1364, %v1322, 0.0
      %v1642 = vadd.f32 %v1640, %v1641
      %v1643 = vsel %vm1364, %v1323, 0.0
      %v1644 = vadd.f32 %v1642, %v1643
      %v1645 = vrot.slane %v1644, 4
      %v1646 = vadd.f32 %v1644, %v1645
      %v1647 = vrot.slane %v1646, 2
      %v1648 = vadd.f32 %v1646, %v1647
      %v1649 = vrot.slane %v1648, 1
      %v1650 = vadd.f32 %v1648, %v1649
      %v1651 = vsel %vm1364, %v1324, 0.0
      %v1652 = vsel %vm1364, %v1325, 0.0
      %v1653 = vadd.f32 %v1651, %v1652
      %v1654 = vsel %vm1364, %v1326, 0.0
      %v1655 = vadd.f32 %v1653, %v1654
      %v1656 = vsel %vm1364, %v1327, 0.0
      %v1657 = vadd.f32 %v1655, %v1656
      %v1658 = vrot.slane %v1657, 4
      %v1659 = vadd.f32 %v1657, %v1658
      %v1660 = vrot.slane %v1659, 2
      %v1661 = vadd.f32 %v1659, %v1660
      %v1662 = vrot.slane %v1661, 1
      %v1663 = vadd.f32 %v1661, %v1662
      %v1664 = vsel %vm1364, %v1328, 0.0
      %v1665 = vsel %vm1364, %v1329, 0.0
      %v1666 = vadd.f32 %v1664, %v1665
      %v1667 = vsel %vm1364, %v1330, 0.0
      %v1668 = vadd.f32 %v1666, %v1667
      %v1669 = vsel %vm1364, %v1331, 0.0
      %v1670 = vadd.f32 %v1668, %v1669
      %v1671 = vrot.slane %v1670, 4
      %v1672 = vadd.f32 %v1670, %v1671
      %v1673 = vrot.slane %v1672, 2
      %v1674 = vadd.f32 %v1672, %v1673
      %v1675 = vrot.slane %v1674, 1
      %v1676 = vadd.f32 %v1674, %v1675
      %v1677 = vsel %vm1364, %v1332, 0.0
      %v1678 = vsel %vm1364, %v1333, 0.0
      %v1679 = vadd.f32 %v1677, %v1678
      %v1680 = vsel %vm1364, %v1334, 0.0
      %v1681 = vadd.f32 %v1679, %v1680
      %v1682 = vsel %vm1364, %v1335, 0.0
      %v1683 = vadd.f32 %v1681, %v1682
      %v1684 = vrot.slane %v1683, 4
      %v1685 = vadd.f32 %v1683, %v1684
      %v1686 = vrot.slane %v1685, 2
      %v1687 = vadd.f32 %v1685, %v1686
      %v1688 = vrot.slane %v1687, 1
      %v1689 = vadd.f32 %v1687, %v1688
      %v1690 = vsel %vm1364, %v1336, 0.0
      %v1691 = vsel %vm1364, %v1337, 0.0
      %v1692 = vadd.f32 %v1690, %v1691
      %v1693 = vsel %vm1364, %v1338, 0.0
      %v1694 = vadd.f32 %v1692, %v1693
      %v1695 = vsel %vm1364, %v1339, 0.0
      %v1696 = vadd.f32 %v1694, %v1695
      %v1697 = vrot.slane %v1696, 4
      %v1698 = vadd.f32 %v1696, %v1697
      %v1699 = vrot.slane %v1698, 2
      %v1700 = vadd.f32 %v1698, %v1699
      %v1701 = vrot.slane %v1700, 1
      %v1702 = vadd.f32 %v1700, %v1701
      %v1703 = vsel %vm1364, %v1340, 0.0
      %v1704 = vsel %vm1364, %v1341, 0.0
      %v1705 = vadd.f32 %v1703, %v1704
      %v1706 = vsel %vm1364, %v1342, 0.0
      %v1707 = vadd.f32 %v1705, %v1706
      %v1708 = vsel %vm1364, %v1343, 0.0
      %v1709 = vadd.f32 %v1707, %v1708
      %v1710 = vrot.slane %v1709, 4
      %v1711 = vadd.f32 %v1709, %v1710
      %v1712 = vrot.slane %v1711, 2
      %v1713 = vadd.f32 %v1711, %v1712
      %v1714 = vrot.slane %v1713, 1
      %v1715 = vadd.f32 %v1713, %v1714
      %v1716 = vsel %vm1364, %v1344, 0.0
      %v1717 = vsel %vm1364, %v1345, 0.0
      %v1718 = vadd.f32 %v1716, %v1717
      %v1719 = vsel %vm1364, %v1346, 0.0
      %v1720 = vadd.f32 %v1718, %v1719
      %v1721 = vsel %vm1364, %v1347, 0.0
      %v1722 = vadd.f32 %v1720, %v1721
      %v1723 = vrot.slane %v1722, 4
      %v1724 = vadd.f32 %v1722, %v1723
      %v1725 = vrot.slane %v1724, 2
      %v1726 = vadd.f32 %v1724, %v1725
      %v1727 = vrot.slane %v1726, 1
      %v1728 = vadd.f32 %v1726, %v1727
      %v1729 = vsel %vm1364, %v1348, 0.0
      %v1730 = vsel %vm1364, %v1349, 0.0
      %v1731 = vadd.f32 %v1729, %v1730
      %v1732 = vsel %vm1364, %v1350, 0.0
      %v1733 = vadd.f32 %v1731, %v1732
      %v1734 = vsel %vm1364, %v1351, 0.0
      %v1735 = vadd.f32 %v1733, %v1734
      %v1736 = vrot.slane %v1735, 4
      %v1737 = vadd.f32 %v1735, %v1736
      %v1738 = vrot.slane %v1737, 2
      %v1739 = vadd.f32 %v1737, %v1738
      %v1740 = vrot.slane %v1739, 1
      %v1741 = vadd.f32 %v1739, %v1740
      %v1742 = vsel %vm1364, %v1352, 0.0
      %v1743 = vsel %vm1364, %v1353, 0.0
      %v1744 = vadd.f32 %v1742, %v1743
      %v1745 = vsel %vm1364, %v1354, 0.0
      %v1746 = vadd.f32 %v1744, %v1745
      %v1747 = vsel %vm1364, %v1355, 0.0
      %v1748 = vadd.f32 %v1746, %v1747
      %v1749 = vrot.slane %v1748, 4
      %v1750 = vadd.f32 %v1748, %v1749
      %v1751 = vrot.slane %v1750, 2
      %v1752 = vadd.f32 %v1750, %v1751
      %v1753 = vrot.slane %v1752, 1
      %v1754 = vadd.f32 %v1752, %v1753
      %v1755 = vsel %vm1364, %v1356, 0.0
      %v1756 = vsel %vm1364, %v1357, 0.0
      %v1757 = vadd.f32 %v1755, %v1756
      %v1758 = vsel %vm1364, %v1358, 0.0
      %v1759 = vadd.f32 %v1757, %v1758
      %v1760 = vsel %vm1364, %v1359, 0.0
      %v1761 = vadd.f32 %v1759, %v1760
      %v1762 = vrot.slane %v1761, 4
      %v1763 = vadd.f32 %v1761, %v1762
      %v1764 = vrot.slane %v1763, 2
      %v1765 = vadd.f32 %v1763, %v1764
      %v1766 = vrot.slane %v1765, 1
      %v1767 = vadd.f32 %v1765, %v1766
      %v1768 = vsel %vm1364, %v1360, 0.0
      %v1769 = vsel %vm1364, %v1361, 0.0
      %v1770 = vadd.f32 %v1768, %v1769
      %v1771 = vsel %vm1364, %v1362, 0.0
      %v1772 = vadd.f32 %v1770, %v1771
      %v1773 = vsel %vm1364, %v1363, 0.0
      %v1774 = vadd.f32 %v1772, %v1773
      %v1775 = vrot.slane %v1774, 4
      %v1776 = vadd.f32 %v1774, %v1775
      %v1777 = vrot.slane %v1776, 2
      %v1778 = vadd.f32 %v1776, %v1777
      %v1779 = vrot.slane %v1778, 1
      %v1780 = vadd.f32 %v1778, %v1779
      %vm1813 = vcmask 1041409
      %v1814 = vsel %vm1813, %v1390, %v1377
      %vm1815 = vcmask 1042434
      %v1816 = vsel %vm1815, %v1403, %v1814
      %vm1817 = vcmask 1043459
      %v1818 = vsel %vm1817, %v1416, %v1816
      %vm1819 = vcmask 1044484
      %v1820 = vsel %vm1819, %v1429, %v1818
      %vm1821 = vcmask 1045509
      %v1822 = vsel %vm1821, %v1442, %v1820
      %vm1823 = vcmask 1046534
      %v1824 = vsel %vm1823, %v1455, %v1822
      %vm1825 = vcmask 1047559
      %v1826 = vsel %vm1825, %v1468, %v1824
      %v1827 = vsel %vm1813, %v1494, %v1481
      %v1828 = vsel %vm1815, %v1507, %v1827
      %v1829 = vsel %vm1817, %v1520, %v1828
      %v1830 = vsel %vm1819, %v1533, %v1829
      %v1831 = vsel %vm1821, %v1546, %v1830
      %v1832 = vsel %vm1823, %v1559, %v1831
      %v1833 = vsel %vm1825, %v1572, %v1832
      %v1834 = vsel %vm1813, %v1598, %v1585
      %v1835 = vsel %vm1815, %v1611, %v1834
      %v1836 = vsel %vm1817, %v1624, %v1835
      %v1837 = vsel %vm1819, %v1637, %v1836
      %v1838 = vsel %vm1821, %v1650, %v1837
      %v1839 = vsel %vm1823, %v1663, %v1838
      %v1840 = vsel %vm1825, %v1676, %v1839
      %v1841 = vsel %vm1813, %v1702, %v1689
      %v1842 = vsel %vm1815, %v1715, %v1841
      %v1843 = vsel %vm1817, %v1728, %v1842
      %v1844 = vsel %vm1819, %v1741, %v1843
      %v1845 = vsel %vm1821, %v1754, %v1844
      %v1846 = vsel %vm1823, %v1767, %v1845
      %v1847 = vsel %vm1825, %v1780, %v1846
      %1852 = vst.msk [vmem:[#allocation2] sm:$0xff] %vm1364, %v1826
      %1853 = vst.msk [vmem:[#allocation2 + $0x8] sm:$0xff] %vm1364, %v1833
      %1854 = vst.msk [vmem:[#allocation2 + $0x10] sm:$0xff] %vm1364, %v1840
      %1855 = vst.msk [vmem:[#allocation2 + $0x18] sm:$0xff] %vm1364, %v1847
      %v1856 = vld [vmem:[%s301] sm:$0xf]
      %v1857 = vld [vmem:[%s301 + $0x4] sm:$0xf]
      %v1858 = vld [vmem:[%s301 + $0x8] sm:$0xf]
      %v1859 = vld [vmem:[%s301 + $0xc] sm:$0xf]
      %v1860 = vunpack.c.l.bf16 %v1856
      %v1861 = vunpack.c.l.bf16 %v1857
      %v1862 = vunpack.c.l.bf16 %v1858
      %v1863 = vunpack.c.l.bf16 %v1859
      %v1864 = vadd.f32 %v1860, %v378
      %v1865 = vadd.f32 %v1861, %v382
      %v1866 = vadd.f32 %v1862, %v386
      %v1867 = vadd.f32 %v1863, %v390
      %v1868 = vadd.f32 %v1860, %v397
      %v1869 = vadd.f32 %v1861, %v401
      %v1870 = vadd.f32 %v1862, %v405
      %v1871 = vadd.f32 %v1863, %v409
      %v1872 = vadd.f32 %v1860, %v416
      %v1873 = vadd.f32 %v1861, %v420
      %v1874 = vadd.f32 %v1862, %v424
      %v1875 = vadd.f32 %v1863, %v428
      %v1876 = vadd.f32 %v1860, %v435
      %v1877 = vadd.f32 %v1861, %v439
      %v1878 = vadd.f32 %v1862, %v443
      %v1879 = vadd.f32 %v1863, %v447
      %v1880 = vadd.f32 %v1860, %v454
      %v1881 = vadd.f32 %v1861, %v458
      %v1882 = vadd.f32 %v1862, %v462
      %v1883 = vadd.f32 %v1863, %v466
      %v1884 = vadd.f32 %v1860, %v473
      %v1885 = vadd.f32 %v1861, %v477
      %v1886 = vadd.f32 %v1862, %v481
      %v1887 = vadd.f32 %v1863, %v485
      %v1888 = vadd.f32 %v1860, %v492
      %v1889 = vadd.f32 %v1861, %v496
      %v1890 = vadd.f32 %v1862, %v500
      %v1891 = vadd.f32 %v1863, %v504
      %v1892 = vadd.f32 %v1860, %v511
      %v1893 = vadd.f32 %v1861, %v515
      %v1894 = vadd.f32 %v1862, %v519
      %v1895 = vadd.f32 %v1863, %v523
      %v1896 = vadd.f32 %v1860, %v530
      %v1897 = vadd.f32 %v1861, %v534
      %v1898 = vadd.f32 %v1862, %v538
      %v1899 = vadd.f32 %v1863, %v542
      %v1900 = vadd.f32 %v1860, %v549
      %v1901 = vadd.f32 %v1861, %v553
      %v1902 = vadd.f32 %v1862, %v557
      %v1903 = vadd.f32 %v1863, %v561
      %v1904 = vadd.f32 %v1860, %v568
      %v1905 = vadd.f32 %v1861, %v572
      %v1906 = vadd.f32 %v1862, %v576
      %v1907 = vadd.f32 %v1863, %v580
      %v1908 = vadd.f32 %v1860, %v587
      %v1909 = vadd.f32 %v1861, %v591
      %v1910 = vadd.f32 %v1862, %v595
      %v1911 = vadd.f32 %v1863, %v599
      %v1912 = vadd.f32 %v1860, %v606
      %v1913 = vadd.f32 %v1861, %v610
      %v1914 = vadd.f32 %v1862, %v614
      %v1915 = vadd.f32 %v1863, %v618
      %v1916 = vadd.f32 %v1860, %v625
      %v1917 = vadd.f32 %v1861, %v629
      %v1918 = vadd.f32 %v1862, %v633
      %v1919 = vadd.f32 %v1863, %v637
      %v1920 = vadd.f32 %v1860, %v644
      %v1921 = vadd.f32 %v1861, %v648
      %v1922 = vadd.f32 %v1862, %v652
      %v1923 = vadd.f32 %v1863, %v656
      %v1924 = vadd.f32 %v1860, %v663
      %v1925 = vadd.f32 %v1861, %v667
      %v1926 = vadd.f32 %v1862, %v671
      %v1927 = vadd.f32 %v1863, %v675
      %v1928 = vadd.f32 %v1860, %v682
      %v1929 = vadd.f32 %v1861, %v686
      %v1930 = vadd.f32 %v1862, %v690
      %v1931 = vadd.f32 %v1863, %v694
      %v1932 = vadd.f32 %v1860, %v701
      %v1933 = vadd.f32 %v1861, %v705
      %v1934 = vadd.f32 %v1862, %v709
      %v1935 = vadd.f32 %v1863, %v713
      %v1936 = vadd.f32 %v1860, %v720
      %v1937 = vadd.f32 %v1861, %v724
      %v1938 = vadd.f32 %v1862, %v728
      %v1939 = vadd.f32 %v1863, %v732
      %v1940 = vadd.f32 %v1860, %v739
      %v1941 = vadd.f32 %v1861, %v743
      %v1942 = vadd.f32 %v1862, %v747
      %v1943 = vadd.f32 %v1863, %v751
      %v1944 = vadd.f32 %v1860, %v758
      %v1945 = vadd.f32 %v1861, %v762
      %v1946 = vadd.f32 %v1862, %v766
      %v1947 = vadd.f32 %v1863, %v770
      %v1948 = vadd.f32 %v1860, %v777
      %v1949 = vadd.f32 %v1861, %v781
      %v1950 = vadd.f32 %v1862, %v785
      %v1951 = vadd.f32 %v1863, %v789
      %v1952 = vadd.f32 %v1860, %v796
      %v1953 = vadd.f32 %v1861, %v800
      %v1954 = vadd.f32 %v1862, %v804
      %v1955 = vadd.f32 %v1863, %v808
      %v1956 = vadd.f32 %v1860, %v815
      %v1957 = vadd.f32 %v1861, %v819
      %v1958 = vadd.f32 %v1862, %v823
      %v1959 = vadd.f32 %v1863, %v827
      %v1960 = vadd.f32 %v1860, %v834
      %v1961 = vadd.f32 %v1861, %v838
      %v1962 = vadd.f32 %v1862, %v842
      %v1963 = vadd.f32 %v1863, %v846
      %v1964 = vadd.f32 %v1860, %v853
      %v1965 = vadd.f32 %v1861, %v857
      %v1966 = vadd.f32 %v1862, %v861
      %v1967 = vadd.f32 %v1863, %v865
      %v1968 = vadd.f32 %v1860, %v872
      %v1969 = vadd.f32 %v1861, %v876
      %v1970 = vadd.f32 %v1862, %v880
      %v1971 = vadd.f32 %v1863, %v884
      %v1972 = vadd.f32 %v1860, %v891
      %v1973 = vadd.f32 %v1861, %v895
      %v1974 = vadd.f32 %v1862, %v899
      %v1975 = vadd.f32 %v1863, %v903
      %v1976 = vadd.f32 %v1860, %v910
      %v1977 = vadd.f32 %v1861, %v914
      %v1978 = vadd.f32 %v1862, %v918
      %v1979 = vadd.f32 %v1863, %v922
      %v1980 = vadd.f32 %v1860, %v929
      %v1981 = vadd.f32 %v1861, %v933
      %v1982 = vadd.f32 %v1862, %v937
      %v1983 = vadd.f32 %v1863, %v941
      %v1984 = vadd.f32 %v1860, %v948
      %v1985 = vadd.f32 %v1861, %v952
      %v1986 = vadd.f32 %v1862, %v956
      %v1987 = vadd.f32 %v1863, %v960
      %v1988 = vadd.f32 %v1860, %v967
      %v1989 = vadd.f32 %v1861, %v971
      %v1990 = vadd.f32 %v1862, %v975
      %v1991 = vadd.f32 %v1863, %v979
      %v1992 = vmax.f32 %v1864, 0.0
      %v1993 = vmax.f32 %v1865, 0.0
      %v1994 = vmax.f32 %v1866, 0.0
      %v1995 = vmax.f32 %v1867, 0.0
      %v1996 = vmax.f32 %v1868, 0.0
      %v1997 = vmax.f32 %v1869, 0.0
      %v1998 = vmax.f32 %v1870, 0.0
      %v1999 = vmax.f32 %v1871, 0.0
      %v2000 = vmax.f32 %v1872, 0.0
      %v2001 = vmax.f32 %v1873, 0.0
      %v2002 = vmax.f32 %v1874, 0.0
      %v2003 = vmax.f32 %v1875, 0.0
      %v2004 = vmax.f32 %v1876, 0.0
      %v2005 = vmax.f32 %v1877, 0.0
      %v2006 = vmax.f32 %v1878, 0.0
      %v2007 = vmax.f32 %v1879, 0.0
      %v2008 = vmax.f32 %v1880, 0.0
      %v2009 = vmax.f32 %v1881, 0.0
      %v2010 = vmax.f32 %v1882, 0.0
      %v2011 = vmax.f32 %v1883, 0.0
      %v2012 = vmax.f32 %v1884, 0.0
      %v2013 = vmax.f32 %v1885, 0.0
      %v2014 = vmax.f32 %v1886, 0.0
      %v2015 = vmax.f32 %v1887, 0.0
      %v2016 = vmax.f32 %v1888, 0.0
      %v2017 = vmax.f32 %v1889, 0.0
      %v2018 = vmax.f32 %v1890, 0.0
      %v2019 = vmax.f32 %v1891, 0.0
      %v2020 = vmax.f32 %v1892, 0.0
      %v2021 = vmax.f32 %v1893, 0.0
      %v2022 = vmax.f32 %v1894, 0.0
      %v2023 = vmax.f32 %v1895, 0.0
      %v2024 = vmax.f32 %v1896, 0.0
      %v2025 = vmax.f32 %v1897, 0.0
      %v2026 = vmax.f32 %v1898, 0.0
      %v2027 = vmax.f32 %v1899, 0.0
      %v2028 = vmax.f32 %v1900, 0.0
      %v2029 = vmax.f32 %v1901, 0.0
      %v2030 = vmax.f32 %v1902, 0.0
      %v2031 = vmax.f32 %v1903, 0.0
      %v2032 = vmax.f32 %v1904, 0.0
      %v2033 = vmax.f32 %v1905, 0.0
      %v2034 = vmax.f32 %v1906, 0.0
      %v2035 = vmax.f32 %v1907, 0.0
      %v2036 = vmax.f32 %v1908, 0.0
      %v2037 = vmax.f32 %v1909, 0.0
      %v2038 = vmax.f32 %v1910, 0.0
      %v2039 = vmax.f32 %v1911, 0.0
      %v2040 = vmax.f32 %v1912, 0.0
      %v2041 = vmax.f32 %v1913, 0.0
      %v2042 = vmax.f32 %v1914, 0.0
      %v2043 = vmax.f32 %v1915, 0.0
      %v2044 = vmax.f32 %v1916, 0.0
      %v2045 = vmax.f32 %v1917, 0.0
      %v2046 = vmax.f32 %v1918, 0.0
      %v2047 = vmax.f32 %v1919, 0.0
      %v2048 = vmax.f32 %v1920, 0.0
      %v2049 = vmax.f32 %v1921, 0.0
      %v2050 = vmax.f32 %v1922, 0.0
      %v2051 = vmax.f32 %v1923, 0.0
      %v2052 = vmax.f32 %v1924, 0.0
      %v2053 = vmax.f32 %v1925, 0.0
      %v2054 = vmax.f32 %v1926, 0.0
      %v2055 = vmax.f32 %v1927, 0.0
      %v2056 = vmax.f32 %v1928, 0.0
      %v2057 = vmax.f32 %v1929, 0.0
      %v2058 = vmax.f32 %v1930, 0.0
      %v2059 = vmax.f32 %v1931, 0.0
      %v2060 = vmax.f32 %v1932, 0.0
      %v2061 = vmax.f32 %v1933, 0.0
      %v2062 = vmax.f32 %v1934, 0.0
      %v2063 = vmax.f32 %v1935, 0.0
      %v2064 = vmax.f32 %v1936, 0.0
      %v2065 = vmax.f32 %v1937, 0.0
      %v2066 = vmax.f32 %v1938, 0.0
      %v2067 = vmax.f32 %v1939, 0.0
      %v2068 = vmax.f32 %v1940, 0.0
      %v2069 = vmax.f32 %v1941, 0.0
      %v2070 = vmax.f32 %v1942, 0.0
      %v2071 = vmax.f32 %v1943, 0.0
      %v2072 = vmax.f32 %v1944, 0.0
      %v2073 = vmax.f32 %v1945, 0.0
      %v2074 = vmax.f32 %v1946, 0.0
      %v2075 = vmax.f32 %v1947, 0.0
      %v2076 = vmax.f32 %v1948, 0.0
      %v2077 = vmax.f32 %v1949, 0.0
      %v2078 = vmax.f32 %v1950, 0.0
      %v2079 = vmax.f32 %v1951, 0.0
      %v2080 = vmax.f32 %v1952, 0.0
      %v2081 = vmax.f32 %v1953, 0.0
      %v2082 = vmax.f32 %v1954, 0.0
      %v2083 = vmax.f32 %v1955, 0.0
      %v2084 = vmax.f32 %v1956, 0.0
      %v2085 = vmax.f32 %v1957, 0.0
      %v2086 = vmax.f32 %v1958, 0.0
      %v2087 = vmax.f32 %v1959, 0.0
      %v2088 = vmax.f32 %v1960, 0.0
      %v2089 = vmax.f32 %v1961, 0.0
      %v2090 = vmax.f32 %v1962, 0.0
      %v2091 = vmax.f32 %v1963, 0.0
      %v2092 = vmax.f32 %v1964, 0.0
      %v2093 = vmax.f32 %v1965, 0.0
      %v2094 = vmax.f32 %v1966, 0.0
      %v2095 = vmax.f32 %v1967, 0.0
      %v2096 = vmax.f32 %v1968, 0.0
      %v2097 = vmax.f32 %v1969, 0.0
      %v2098 = vmax.f32 %v1970, 0.0
      %v2099 = vmax.f32 %v1971, 0.0
      %v2100 = vmax.f32 %v1972, 0.0
      %v2101 = vmax.f32 %v1973, 0.0
      %v2102 = vmax.f32 %v1974, 0.0
      %v2103 = vmax.f32 %v1975, 0.0
      %v2104 = vmax.f32 %v1976, 0.0
      %v2105 = vmax.f32 %v1977, 0.0
      %v2106 = vmax.f32 %v1978, 0.0
      %v2107 = vmax.f32 %v1979, 0.0
      %v2108 = vmax.f32 %v1980, 0.0
      %v2109 = vmax.f32 %v1981, 0.0
      %v2110 = vmax.f32 %v1982, 0.0
      %v2111 = vmax.f32 %v1983, 0.0
      %v2112 = vmax.f32 %v1984, 0.0
      %v2113 = vmax.f32 %v1985, 0.0
      %v2114 = vmax.f32 %v1986, 0.0
      %v2115 = vmax.f32 %v1987, 0.0
      %v2116 = vmax.f32 %v1988, 0.0
      %v2117 = vmax.f32 %v1989, 0.0
      %v2118 = vmax.f32 %v1990, 0.0
      %v2119 = vmax.f32 %v1991, 0.0
      %v2120 = vmul.f32 %v1992, %v351
      %v2121 = vmul.f32 %v1993, %v355
      %v2122 = vmul.f32 %v1994, %v359
      %v2123 = vmul.f32 %v1995, %v363
      %v2124 = vmul.f32 %v1996, %v351
      %v2125 = vmul.f32 %v1997, %v355
      %v2126 = vmul.f32 %v1998, %v359
      %v2127 = vmul.f32 %v1999, %v363
      %v2128 = vmul.f32 %v2000, %v351
      %v2129 = vmul.f32 %v2001, %v355
      %v2130 = vmul.f32 %v2002, %v359
      %v2131 = vmul.f32 %v2003, %v363
      %v2132 = vmul.f32 %v2004, %v351
      %v2133 = vmul.f32 %v2005, %v355
      %v2134 = vmul.f32 %v2006, %v359
      %v2135 = vmul.f32 %v2007, %v363
      %v2136 = vmul.f32 %v2008, %v351
      %v2137 = vmul.f32 %v2009, %v355
      %v2138 = vmul.f32 %v2010, %v359
      %v2139 = vmul.f32 %v2011, %v363
      %v2140 = vmul.f32 %v2012, %v351
      %v2141 = vmul.f32 %v2013, %v355
      %v2142 = vmul.f32 %v2014, %v359
      %v2143 = vmul.f32 %v2015, %v363
      %v2144 = vmul.f32 %v2016, %v351
      %v2145 = vmul.f32 %v2017, %v355
      %v2146 = vmul.f32 %v2018, %v359
      %v2147 = vmul.f32 %v2019, %v363
      %v2148 = vmul.f32 %v2020, %v351
      %v2149 = vmul.f32 %v2021, %v355
      %v2150 = vmul.f32 %v2022, %v359
      %v2151 = vmul.f32 %v2023, %v363
      %v2152 = vmul.f32 %v2024, %v351
      %v2153 = vmul.f32 %v2025, %v355
      %v2154 = vmul.f32 %v2026, %v359
      %v2155 = vmul.f32 %v2027, %v363
      %v2156 = vmul.f32 %v2028, %v351
      %v2157 = vmul.f32 %v2029, %v355
      %v2158 = vmul.f32 %v2030, %v359
      %v2159 = vmul.f32 %v2031, %v363
      %v2160 = vmul.f32 %v2032, %v351
      %v2161 = vmul.f32 %v2033, %v355
      %v2162 = vmul.f32 %v2034, %v359
      %v2163 = vmul.f32 %v2035, %v363
      %v2164 = vmul.f32 %v2036, %v351
      %v2165 = vmul.f32 %v2037, %v355
      %v2166 = vmul.f32 %v2038, %v359
      %v2167 = vmul.f32 %v2039, %v363
      %v2168 = vmul.f32 %v2040, %v351
      %v2169 = vmul.f32 %v2041, %v355
      %v2170 = vmul.f32 %v2042, %v359
      %v2171 = vmul.f32 %v2043, %v363
      %v2172 = vmul.f32 %v2044, %v351
      %v2173 = vmul.f32 %v2045, %v355
      %v2174 = vmul.f32 %v2046, %v359
      %v2175 = vmul.f32 %v2047, %v363
      %v2176 = vmul.f32 %v2048, %v351
      %v2177 = vmul.f32 %v2049, %v355
      %v2178 = vmul.f32 %v2050, %v359
      %v2179 = vmul.f32 %v2051, %v363
      %v2180 = vmul.f32 %v2052, %v351
      %v2181 = vmul.f32 %v2053, %v355
      %v2182 = vmul.f32 %v2054, %v359
      %v2183 = vmul.f32 %v2055, %v363
      %v2184 = vmul.f32 %v2056, %v351
      %v2185 = vmul.f32 %v2057, %v355
      %v2186 = vmul.f32 %v2058, %v359
      %v2187 = vmul.f32 %v2059, %v363
      %v2188 = vmul.f32 %v2060, %v351
      %v2189 = vmul.f32 %v2061, %v355
      %v2190 = vmul.f32 %v2062, %v359
      %v2191 = vmul.f32 %v2063, %v363
      %v2192 = vmul.f32 %v2064, %v351
      %v2193 = vmul.f32 %v2065, %v355
      %v2194 = vmul.f32 %v2066, %v359
      %v2195 = vmul.f32 %v2067, %v363
      %v2196 = vmul.f32 %v2068, %v351
      %v2197 = vmul.f32 %v2069, %v355
      %v2198 = vmul.f32 %v2070, %v359
      %v2199 = vmul.f32 %v2071, %v363
      %v2200 = vmul.f32 %v2072, %v351
      %v2201 = vmul.f32 %v2073, %v355
      %v2202 = vmul.f32 %v2074, %v359
      %v2203 = vmul.f32 %v2075, %v363
      %v2204 = vmul.f32 %v2076, %v351
      %v2205 = vmul.f32 %v2077, %v355
      %v2206 = vmul.f32 %v2078, %v359
      %v2207 = vmul.f32 %v2079, %v363
      %v2208 = vmul.f32 %v2080, %v351
      %v2209 = vmul.f32 %v2081, %v355
      %v2210 = vmul.f32 %v2082, %v359
      %v2211 = vmul.f32 %v2083, %v363
      %v2212 = vmul.f32 %v2084, %v351
      %v2213 = vmul.f32 %v2085, %v355
      %v2214 = vmul.f32 %v2086, %v359
      %v2215 = vmul.f32 %v2087, %v363
      %v2216 = vmul.f32 %v2088, %v351
      %v2217 = vmul.f32 %v2089, %v355
      %v2218 = vmul.f32 %v2090, %v359
      %v2219 = vmul.f32 %v2091, %v363
      %v2220 = vmul.f32 %v2092, %v351
      %v2221 = vmul.f32 %v2093, %v355
      %v2222 = vmul.f32 %v2094, %v359
      %v2223 = vmul.f32 %v2095, %v363
      %v2224 = vmul.f32 %v2096, %v351
      %v2225 = vmul.f32 %v2097, %v355
      %v2226 = vmul.f32 %v2098, %v359
      %v2227 = vmul.f32 %v2099, %v363
      %v2228 = vmul.f32 %v2100, %v351
      %v2229 = vmul.f32 %v2101, %v355
      %v2230 = vmul.f32 %v2102, %v359
      %v2231 = vmul.f32 %v2103, %v363
      %v2232 = vmul.f32 %v2104, %v351
      %v2233 = vmul.f32 %v2105, %v355
      %v2234 = vmul.f32 %v2106, %v359
      %v2235 = vmul.f32 %v2107, %v363
      %v2236 = vmul.f32 %v2108, %v351
      %v2237 = vmul.f32 %v2109, %v355
      %v2238 = vmul.f32 %v2110, %v359
      %v2239 = vmul.f32 %v2111, %v363
      %v2240 = vmul.f32 %v2112, %v351
      %v2241 = vmul.f32 %v2113, %v355
      %v2242 = vmul.f32 %v2114, %v359
      %v2243 = vmul.f32 %v2115, %v363
      %v2244 = vmul.f32 %v2116, %v351
      %v2245 = vmul.f32 %v2117, %v355
      %v2246 = vmul.f32 %v2118, %v359
      %v2247 = vmul.f32 %v2119, %v363
      %vm2248 = vcmask 523520
      %v2249 = vsel %vm2248, %v2120, 0.0
      %v2250 = vsel %vm2248, %v2121, 0.0
      %v2251 = vadd.f32 %v2249, %v2250
      %v2252 = vsel %vm2248, %v2122, 0.0
      %v2253 = vadd.f32 %v2251, %v2252
      %v2254 = vsel %vm2248, %v2123, 0.0
      %v2255 = vadd.f32 %v2253, %v2254
      %v2256 = vrot.slane %v2255, 4
      %v2257 = vadd.f32 %v2255, %v2256
      %v2258 = vrot.slane %v2257, 2
      %v2259 = vadd.f32 %v2257, %v2258
      %v2260 = vrot.slane %v2259, 1
      %v2261 = vadd.f32 %v2259, %v2260
      %v2262 = vsel %vm2248, %v2124, 0.0
      %v2263 = vsel %vm2248, %v2125, 0.0
      %v2264 = vadd.f32 %v2262, %v2263
      %v2265 = vsel %vm2248, %v2126, 0.0
      %v2266 = vadd.f32 %v2264, %v2265
      %v2267 = vsel %vm2248, %v2127, 0.0
      %v2268 = vadd.f32 %v2266, %v2267
      %v2269 = vrot.slane %v2268, 4
      %v2270 = vadd.f32 %v2268, %v2269
      %v2271 = vrot.slane %v2270, 2
      %v2272 = vadd.f32 %v2270, %v2271
      %v2273 = vrot.slane %v2272, 1
      %v2274 = vadd.f32 %v2272, %v2273
      %v2275 = vsel %vm2248, %v2128, 0.0
      %v2276 = vsel %vm2248, %v2129, 0.0
      %v2277 = vadd.f32 %v2275, %v2276
      %v2278 = vsel %vm2248, %v2130, 0.0
      %v2279 = vadd.f32 %v2277, %v2278
      %v2280 = vsel %vm2248, %v2131, 0.0
      %v2281 = vadd.f32 %v2279, %v2280
      %v2282 = vrot.slane %v2281, 4
      %v2283 = vadd.f32 %v2281, %v2282
      %v2284 = vrot.slane %v2283, 2
      %v2285 = vadd.f32 %v2283, %v2284
      %v2286 = vrot.slane %v2285, 1
      %v2287 = vadd.f32 %v2285, %v2286
      %v2288 = vsel %vm2248, %v2132, 0.0
      %v2289 = vsel %vm2248, %v2133, 0.0
      %v2290 = vadd.f32 %v2288, %v2289
      %v2291 = vsel %vm2248, %v2134, 0.0
      %v2292 = vadd.f32 %v2290, %v2291
      %v2293 = vsel %vm2248, %v2135, 0.0
      %v2294 = vadd.f32 %v2292, %v2293
      %v2295 = vrot.slane %v2294, 4
      %v2296 = vadd.f32 %v2294, %v2295
      %v2297 = vrot.slane %v2296, 2
      %v2298 = vadd.f32 %v2296, %v2297
      %v2299 = vrot.slane %v2298, 1
      %v2300 = vadd.f32 %v2298, %v2299
      %v2301 = vsel %vm2248, %v2136, 0.0
      %v2302 = vsel %vm2248, %v2137, 0.0
      %v2303 = vadd.f32 %v2301, %v2302
      %v2304 = vsel %vm2248, %v2138, 0.0
      %v2305 = vadd.f32 %v2303, %v2304
      %v2306 = vsel %vm2248, %v2139, 0.0
      %v2307 = vadd.f32 %v2305, %v2306
      %v2308 = vrot.slane %v2307, 4
      %v2309 = vadd.f32 %v2307, %v2308
      %v2310 = vrot.slane %v2309, 2
      %v2311 = vadd.f32 %v2309, %v2310
      %v2312 = vrot.slane %v2311, 1
      %v2313 = vadd.f32 %v2311, %v2312
      %v2314 = vsel %vm2248, %v2140, 0.0
      %v2315 = vsel %vm2248, %v2141, 0.0
      %v2316 = vadd.f32 %v2314, %v2315
      %v2317 = vsel %vm2248, %v2142, 0.0
      %v2318 = vadd.f32 %v2316, %v2317
      %v2319 = vsel %vm2248, %v2143, 0.0
      %v2320 = vadd.f32 %v2318, %v2319
      %v2321 = vrot.slane %v2320, 4
      %v2322 = vadd.f32 %v2320, %v2321
      %v2323 = vrot.slane %v2322, 2
      %v2324 = vadd.f32 %v2322, %v2323
      %v2325 = vrot.slane %v2324, 1
      %v2326 = vadd.f32 %v2324, %v2325
      %v2327 = vsel %vm2248, %v2144, 0.0
      %v2328 = vsel %vm2248, %v2145, 0.0
      %v2329 = vadd.f32 %v2327, %v2328
      %v2330 = vsel %vm2248, %v2146, 0.0
      %v2331 = vadd.f32 %v2329, %v2330
      %v2332 = vsel %vm2248, %v2147, 0.0
      %v2333 = vadd.f32 %v2331, %v2332
      %v2334 = vrot.slane %v2333, 4
      %v2335 = vadd.f32 %v2333, %v2334
      %v2336 = vrot.slane %v2335, 2
      %v2337 = vadd.f32 %v2335, %v2336
      %v2338 = vrot.slane %v2337, 1
      %v2339 = vadd.f32 %v2337, %v2338
      %v2340 = vsel %vm2248, %v2148, 0.0
      %v2341 = vsel %vm2248, %v2149, 0.0
      %v2342 = vadd.f32 %v2340, %v2341
      %v2343 = vsel %vm2248, %v2150, 0.0
      %v2344 = vadd.f32 %v2342, %v2343
      %v2345 = vsel %vm2248, %v2151, 0.0
      %v2346 = vadd.f32 %v2344, %v2345
      %v2347 = vrot.slane %v2346, 4
      %v2348 = vadd.f32 %v2346, %v2347
      %v2349 = vrot.slane %v2348, 2
      %v2350 = vadd.f32 %v2348, %v2349
      %v2351 = vrot.slane %v2350, 1
      %v2352 = vadd.f32 %v2350, %v2351
      %v2353 = vsel %vm2248, %v2152, 0.0
      %v2354 = vsel %vm2248, %v2153, 0.0
      %v2355 = vadd.f32 %v2353, %v2354
      %v2356 = vsel %vm2248, %v2154, 0.0
      %v2357 = vadd.f32 %v2355, %v2356
      %v2358 = vsel %vm2248, %v2155, 0.0
      %v2359 = vadd.f32 %v2357, %v2358
      %v2360 = vrot.slane %v2359, 4
      %v2361 = vadd.f32 %v2359, %v2360
      %v2362 = vrot.slane %v2361, 2
      %v2363 = vadd.f32 %v2361, %v2362
      %v2364 = vrot.slane %v2363, 1
      %v2365 = vadd.f32 %v2363, %v2364
      %v2366 = vsel %vm2248, %v2156, 0.0
      %v2367 = vsel %vm2248, %v2157, 0.0
      %v2368 = vadd.f32 %v2366, %v2367
      %v2369 = vsel %vm2248, %v2158, 0.0
      %v2370 = vadd.f32 %v2368, %v2369
      %v2371 = vsel %vm2248, %v2159, 0.0
      %v2372 = vadd.f32 %v2370, %v2371
      %v2373 = vrot.slane %v2372, 4
      %v2374 = vadd.f32 %v2372, %v2373
      %v2375 = vrot.slane %v2374, 2
      %v2376 = vadd.f32 %v2374, %v2375
      %v2377 = vrot.slane %v2376, 1
      %v2378 = vadd.f32 %v2376, %v2377
      %v2379 = vsel %vm2248, %v2160, 0.0
      %v2380 = vsel %vm2248, %v2161, 0.0
      %v2381 = vadd.f32 %v2379, %v2380
      %v2382 = vsel %vm2248, %v2162, 0.0
      %v2383 = vadd.f32 %v2381, %v2382
      %v2384 = vsel %vm2248, %v2163, 0.0
      %v2385 = vadd.f32 %v2383, %v2384
      %v2386 = vrot.slane %v2385, 4
      %v2387 = vadd.f32 %v2385, %v2386
      %v2388 = vrot.slane %v2387, 2
      %v2389 = vadd.f32 %v2387, %v2388
      %v2390 = vrot.slane %v2389, 1
      %v2391 = vadd.f32 %v2389, %v2390
      %v2392 = vsel %vm2248, %v2164, 0.0
      %v2393 = vsel %vm2248, %v2165, 0.0
      %v2394 = vadd.f32 %v2392, %v2393
      %v2395 = vsel %vm2248, %v2166, 0.0
      %v2396 = vadd.f32 %v2394, %v2395
      %v2397 = vsel %vm2248, %v2167, 0.0
      %v2398 = vadd.f32 %v2396, %v2397
      %v2399 = vrot.slane %v2398, 4
      %v2400 = vadd.f32 %v2398, %v2399
      %v2401 = vrot.slane %v2400, 2
      %v2402 = vadd.f32 %v2400, %v2401
      %v2403 = vrot.slane %v2402, 1
      %v2404 = vadd.f32 %v2402, %v2403
      %v2405 = vsel %vm2248, %v2168, 0.0
      %v2406 = vsel %vm2248, %v2169, 0.0
      %v2407 = vadd.f32 %v2405, %v2406
      %v2408 = vsel %vm2248, %v2170, 0.0
      %v2409 = vadd.f32 %v2407, %v2408
      %v2410 = vsel %vm2248, %v2171, 0.0
      %v2411 = vadd.f32 %v2409, %v2410
      %v2412 = vrot.slane %v2411, 4
      %v2413 = vadd.f32 %v2411, %v2412
      %v2414 = vrot.slane %v2413, 2
      %v2415 = vadd.f32 %v2413, %v2414
      %v2416 = vrot.slane %v2415, 1
      %v2417 = vadd.f32 %v2415, %v2416
      %v2418 = vsel %vm2248, %v2172, 0.0
      %v2419 = vsel %vm2248, %v2173, 0.0
      %v2420 = vadd.f32 %v2418, %v2419
      %v2421 = vsel %vm2248, %v2174, 0.0
      %v2422 = vadd.f32 %v2420, %v2421
      %v2423 = vsel %vm2248, %v2175, 0.0
      %v2424 = vadd.f32 %v2422, %v2423
      %v2425 = vrot.slane %v2424, 4
      %v2426 = vadd.f32 %v2424, %v2425
      %v2427 = vrot.slane %v2426, 2
      %v2428 = vadd.f32 %v2426, %v2427
      %v2429 = vrot.slane %v2428, 1
      %v2430 = vadd.f32 %v2428, %v2429
      %v2431 = vsel %vm2248, %v2176, 0.0
      %v2432 = vsel %vm2248, %v2177, 0.0
      %v2433 = vadd.f32 %v2431, %v2432
      %v2434 = vsel %vm2248, %v2178, 0.0
      %v2435 = vadd.f32 %v2433, %v2434
      %v2436 = vsel %vm2248, %v2179, 0.0
      %v2437 = vadd.f32 %v2435, %v2436
      %v2438 = vrot.slane %v2437, 4
      %v2439 = vadd.f32 %v2437, %v2438
      %v2440 = vrot.slane %v2439, 2
      %v2441 = vadd.f32 %v2439, %v2440
      %v2442 = vrot.slane %v2441, 1
      %v2443 = vadd.f32 %v2441, %v2442
      %v2444 = vsel %vm2248, %v2180, 0.0
      %v2445 = vsel %vm2248, %v2181, 0.0
      %v2446 = vadd.f32 %v2444, %v2445
      %v2447 = vsel %vm2248, %v2182, 0.0
      %v2448 = vadd.f32 %v2446, %v2447
      %v2449 = vsel %vm2248, %v2183, 0.0
      %v2450 = vadd.f32 %v2448, %v2449
      %v2451 = vrot.slane %v2450, 4
      %v2452 = vadd.f32 %v2450, %v2451
      %v2453 = vrot.slane %v2452, 2
      %v2454 = vadd.f32 %v2452, %v2453
      %v2455 = vrot.slane %v2454, 1
      %v2456 = vadd.f32 %v2454, %v2455
      %v2457 = vsel %vm2248, %v2184, 0.0
      %v2458 = vsel %vm2248, %v2185, 0.0
      %v2459 = vadd.f32 %v2457, %v2458
      %v2460 = vsel %vm2248, %v2186, 0.0
      %v2461 = vadd.f32 %v2459, %v2460
      %v2462 = vsel %vm2248, %v2187, 0.0
      %v2463 = vadd.f32 %v2461, %v2462
      %v2464 = vrot.slane %v2463, 4
      %v2465 = vadd.f32 %v2463, %v2464
      %v2466 = vrot.slane %v2465, 2
      %v2467 = vadd.f32 %v2465, %v2466
      %v2468 = vrot.slane %v2467, 1
      %v2469 = vadd.f32 %v2467, %v2468
      %v2470 = vsel %vm2248, %v2188, 0.0
      %v2471 = vsel %vm2248, %v2189, 0.0
      %v2472 = vadd.f32 %v2470, %v2471
      %v2473 = vsel %vm2248, %v2190, 0.0
      %v2474 = vadd.f32 %v2472, %v2473
      %v2475 = vsel %vm2248, %v2191, 0.0
      %v2476 = vadd.f32 %v2474, %v2475
      %v2477 = vrot.slane %v2476, 4
      %v2478 = vadd.f32 %v2476, %v2477
      %v2479 = vrot.slane %v2478, 2
      %v2480 = vadd.f32 %v2478, %v2479
      %v2481 = vrot.slane %v2480, 1
      %v2482 = vadd.f32 %v2480, %v2481
      %v2483 = vsel %vm2248, %v2192, 0.0
      %v2484 = vsel %vm2248, %v2193, 0.0
      %v2485 = vadd.f32 %v2483, %v2484
      %v2486 = vsel %vm2248, %v2194, 0.0
      %v2487 = vadd.f32 %v2485, %v2486
      %v2488 = vsel %vm2248, %v2195, 0.0
      %v2489 = vadd.f32 %v2487, %v2488
      %v2490 = vrot.slane %v2489, 4
      %v2491 = vadd.f32 %v2489, %v2490
      %v2492 = vrot.slane %v2491, 2
      %v2493 = vadd.f32 %v2491, %v2492
      %v2494 = vrot.slane %v2493, 1
      %v2495 = vadd.f32 %v2493, %v2494
      %v2496 = vsel %vm2248, %v2196, 0.0
      %v2497 = vsel %vm2248, %v2197, 0.0
      %v2498 = vadd.f32 %v2496, %v2497
      %v2499 = vsel %vm2248, %v2198, 0.0
      %v2500 = vadd.f32 %v2498, %v2499
      %v2501 = vsel %vm2248, %v2199, 0.0
      %v2502 = vadd.f32 %v2500, %v2501
      %v2503 = vrot.slane %v2502, 4
      %v2504 = vadd.f32 %v2502, %v2503
      %v2505 = vrot.slane %v2504, 2
      %v2506 = vadd.f32 %v2504, %v2505
      %v2507 = vrot.slane %v2506, 1
      %v2508 = vadd.f32 %v2506, %v2507
      %v2509 = vsel %vm2248, %v2200, 0.0
      %v2510 = vsel %vm2248, %v2201, 0.0
      %v2511 = vadd.f32 %v2509, %v2510
      %v2512 = vsel %vm2248, %v2202, 0.0
      %v2513 = vadd.f32 %v2511, %v2512
      %v2514 = vsel %vm2248, %v2203, 0.0
      %v2515 = vadd.f32 %v2513, %v2514
      %v2516 = vrot.slane %v2515, 4
      %v2517 = vadd.f32 %v2515, %v2516
      %v2518 = vrot.slane %v2517, 2
      %v2519 = vadd.f32 %v2517, %v2518
      %v2520 = vrot.slane %v2519, 1
      %v2521 = vadd.f32 %v2519, %v2520
      %v2522 = vsel %vm2248, %v2204, 0.0
      %v2523 = vsel %vm2248, %v2205, 0.0
      %v2524 = vadd.f32 %v2522, %v2523
      %v2525 = vsel %vm2248, %v2206, 0.0
      %v2526 = vadd.f32 %v2524, %v2525
      %v2527 = vsel %vm2248, %v2207, 0.0
      %v2528 = vadd.f32 %v2526, %v2527
      %v2529 = vrot.slane %v2528, 4
      %v2530 = vadd.f32 %v2528, %v2529
      %v2531 = vrot.slane %v2530, 2
      %v2532 = vadd.f32 %v2530, %v2531
      %v2533 = vrot.slane %v2532, 1
      %v2534 = vadd.f32 %v2532, %v2533
      %v2535 = vsel %vm2248, %v2208, 0.0
      %v2536 = vsel %vm2248, %v2209, 0.0
      %v2537 = vadd.f32 %v2535, %v2536
      %v2538 = vsel %vm2248, %v2210, 0.0
      %v2539 = vadd.f32 %v2537, %v2538
      %v2540 = vsel %vm2248, %v2211, 0.0
      %v2541 = vadd.f32 %v2539, %v2540
      %v2542 = vrot.slane %v2541, 4
      %v2543 = vadd.f32 %v2541, %v2542
      %v2544 = vrot.slane %v2543, 2
      %v2545 = vadd.f32 %v2543, %v2544
      %v2546 = vrot.slane %v2545, 1
      %v2547 = vadd.f32 %v2545, %v2546
      %v2548 = vsel %vm2248, %v2212, 0.0
      %v2549 = vsel %vm2248, %v2213, 0.0
      %v2550 = vadd.f32 %v2548, %v2549
      %v2551 = vsel %vm2248, %v2214, 0.0
      %v2552 = vadd.f32 %v2550, %v2551
      %v2553 = vsel %vm2248, %v2215, 0.0
      %v2554 = vadd.f32 %v2552, %v2553
      %v2555 = vrot.slane %v2554, 4
      %v2556 = vadd.f32 %v2554, %v2555
      %v2557 = vrot.slane %v2556, 2
      %v2558 = vadd.f32 %v2556, %v2557
      %v2559 = vrot.slane %v2558, 1
      %v2560 = vadd.f32 %v2558, %v2559
      %v2561 = vsel %vm2248, %v2216, 0.0
      %v2562 = vsel %vm2248, %v2217, 0.0
      %v2563 = vadd.f32 %v2561, %v2562
      %v2564 = vsel %vm2248, %v2218, 0.0
      %v2565 = vadd.f32 %v2563, %v2564
      %v2566 = vsel %vm2248, %v2219, 0.0
      %v2567 = vadd.f32 %v2565, %v2566
      %v2568 = vrot.slane %v2567, 4
      %v2569 = vadd.f32 %v2567, %v2568
      %v2570 = vrot.slane %v2569, 2
      %v2571 = vadd.f32 %v2569, %v2570
      %v2572 = vrot.slane %v2571, 1
      %v2573 = vadd.f32 %v2571, %v2572
      %v2574 = vsel %vm2248, %v2220, 0.0
      %v2575 = vsel %vm2248, %v2221, 0.0
      %v2576 = vadd.f32 %v2574, %v2575
      %v2577 = vsel %vm2248, %v2222, 0.0
      %v2578 = vadd.f32 %v2576, %v2577
      %v2579 = vsel %vm2248, %v2223, 0.0
      %v2580 = vadd.f32 %v2578, %v2579
      %v2581 = vrot.slane %v2580, 4
      %v2582 = vadd.f32 %v2580, %v2581
      %v2583 = vrot.slane %v2582, 2
      %v2584 = vadd.f32 %v2582, %v2583
      %v2585 = vrot.slane %v2584, 1
      %v2586 = vadd.f32 %v2584, %v2585
      %v2587 = vsel %vm2248, %v2224, 0.0
      %v2588 = vsel %vm2248, %v2225, 0.0
      %v2589 = vadd.f32 %v2587, %v2588
      %v2590 = vsel %vm2248, %v2226, 0.0
      %v2591 = vadd.f32 %v2589, %v2590
      %v2592 = vsel %vm2248, %v2227, 0.0
      %v2593 = vadd.f32 %v2591, %v2592
      %v2594 = vrot.slane %v2593, 4
      %v2595 = vadd.f32 %v2593, %v2594
      %v2596 = vrot.slane %v2595, 2
      %v2597 = vadd.f32 %v2595, %v2596
      %v2598 = vrot.slane %v2597, 1
      %v2599 = vadd.f32 %v2597, %v2598
      %v2600 = vsel %vm2248, %v2228, 0.0
      %v2601 = vsel %vm2248, %v2229, 0.0
      %v2602 = vadd.f32 %v2600, %v2601
      %v2603 = vsel %vm2248, %v2230, 0.0
      %v2604 = vadd.f32 %v2602, %v2603
      %v2605 = vsel %vm2248, %v2231, 0.0
      %v2606 = vadd.f32 %v2604, %v2605
      %v2607 = vrot.slane %v2606, 4
      %v2608 = vadd.f32 %v2606, %v2607
      %v2609 = vrot.slane %v2608, 2
      %v2610 = vadd.f32 %v2608, %v2609
      %v2611 = vrot.slane %v2610, 1
      %v2612 = vadd.f32 %v2610, %v2611
      %v2613 = vsel %vm2248, %v2232, 0.0
      %v2614 = vsel %vm2248, %v2233, 0.0
      %v2615 = vadd.f32 %v2613, %v2614
      %v2616 = vsel %vm2248, %v2234, 0.0
      %v2617 = vadd.f32 %v2615, %v2616
      %v2618 = vsel %vm2248, %v2235, 0.0
      %v2619 = vadd.f32 %v2617, %v2618
      %v2620 = vrot.slane %v2619, 4
      %v2621 = vadd.f32 %v2619, %v2620
      %v2622 = vrot.slane %v2621, 2
      %v2623 = vadd.f32 %v2621, %v2622
      %v2624 = vrot.slane %v2623, 1
      %v2625 = vadd.f32 %v2623, %v2624
      %v2626 = vsel %vm2248, %v2236, 0.0
      %v2627 = vsel %vm2248, %v2237, 0.0
      %v2628 = vadd.f32 %v2626, %v2627
      %v2629 = vsel %vm2248, %v2238, 0.0
      %v2630 = vadd.f32 %v2628, %v2629
      %v2631 = vsel %vm2248, %v2239, 0.0
      %v2632 = vadd.f32 %v2630, %v2631
      %v2633 = vrot.slane %v2632, 4
      %v2634 = vadd.f32 %v2632, %v2633
      %v2635 = vrot.slane %v2634, 2
      %v2636 = vadd.f32 %v2634, %v2635
      %v2637 = vrot.slane %v2636, 1
      %v2638 = vadd.f32 %v2636, %v2637
      %v2639 = vsel %vm2248, %v2240, 0.0
      %v2640 = vsel %vm2248, %v2241, 0.0
      %v2641 = vadd.f32 %v2639, %v2640
      %v2642 = vsel %vm2248, %v2242, 0.0
      %v2643 = vadd.f32 %v2641, %v2642
      %v2644 = vsel %vm2248, %v2243, 0.0
      %v2645 = vadd.f32 %v2643, %v2644
      %v2646 = vrot.slane %v2645, 4
      %v2647 = vadd.f32 %v2645, %v2646
      %v2648 = vrot.slane %v2647, 2
      %v2649 = vadd.f32 %v2647, %v2648
      %v2650 = vrot.slane %v2649, 1
      %v2651 = vadd.f32 %v2649, %v2650
      %v2652 = vsel %vm2248, %v2244, 0.0
      %v2653 = vsel %vm2248, %v2245, 0.0
      %v2654 = vadd.f32 %v2652, %v2653
      %v2655 = vsel %vm2248, %v2246, 0.0
      %v2656 = vadd.f32 %v2654, %v2655
      %v2657 = vsel %vm2248, %v2247, 0.0
      %v2658 = vadd.f32 %v2656, %v2657
      %v2659 = vrot.slane %v2658, 4
      %v2660 = vadd.f32 %v2658, %v2659
      %v2661 = vrot.slane %v2660, 2
      %v2662 = vadd.f32 %v2660, %v2661
      %v2663 = vrot.slane %v2662, 1
      %v2664 = vadd.f32 %v2662, %v2663
      %v2697 = vsel %vm1813, %v2274, %v2261
      %v2698 = vsel %vm1815, %v2287, %v2697
      %v2699 = vsel %vm1817, %v2300, %v2698
      %v2700 = vsel %vm1819, %v2313, %v2699
      %v2701 = vsel %vm1821, %v2326, %v2700
      %v2702 = vsel %vm1823, %v2339, %v2701
      %v2703 = vsel %vm1825, %v2352, %v2702
      %v2704 = vsel %vm1813, %v2378, %v2365
      %v2705 = vsel %vm1815, %v2391, %v2704
      %v2706 = vsel %vm1817, %v2404, %v2705
      %v2707 = vsel %vm1819, %v2417, %v2706
      %v2708 = vsel %vm1821, %v2430, %v2707
      %v2709 = vsel %vm1823, %v2443, %v2708
      %v2710 = vsel %vm1825, %v2456, %v2709
      %v2711 = vsel %vm1813, %v2482, %v2469
      %v2712 = vsel %vm1815, %v2495, %v2711
      %v2713 = vsel %vm1817, %v2508, %v2712
      %v2714 = vsel %vm1819, %v2521, %v2713
      %v2715 = vsel %vm1821, %v2534, %v2714
      %v2716 = vsel %vm1823, %v2547, %v2715
      %v2717 = vsel %vm1825, %v2560, %v2716
      %v2718 = vsel %vm1813, %v2586, %v2573
      %v2719 = vsel %vm1815, %v2599, %v2718
      %v2720 = vsel %vm1817, %v2612, %v2719
      %v2721 = vsel %vm1819, %v2625, %v2720
      %v2722 = vsel %vm1821, %v2638, %v2721
      %v2723 = vsel %vm1823, %v2651, %v2722
      %v2724 = vsel %vm1825, %v2664, %v2723
      %2729 = vst.msk [vmem:[#allocation2] sm:$0xff] %vm2248, %v2703
      %2730 = vst.msk [vmem:[#allocation2 + $0x8] sm:$0xff] %vm2248, %v2710
      %2731 = vst.msk [vmem:[#allocation2 + $0x10] sm:$0xff] %vm2248, %v2717
      %2732 = vst.msk [vmem:[#allocation2 + $0x18] sm:$0xff] %vm2248, %v2724
      %v2733 = vld [vmem:[#allocation2] sm:$0xff]
      %v2734 = vld [vmem:[#allocation2 + $0x8] sm:$0xff]
      %v2735 = vld [vmem:[#allocation2 + $0x10] sm:$0xff]
      %v2736 = vld [vmem:[#allocation2 + $0x18] sm:$0xff]
      %v2737 = vld [vmem:[%s324] sm:$0xff]
      %v2738 = vunpack.c.0.s8 %v2737
      %v2739 = vunpack.c.1.s8 %v2737
      %v2740 = vunpack.c.2.s8 %v2737
      %v2741 = vunpack.c.3.s8 %v2737
      %v2742 = vcvt.s32.f32 %v2738
      %v2743 = vcvt.s32.f32 %v2739
      %v2744 = vcvt.s32.f32 %v2740
      %v2745 = vcvt.s32.f32 %v2741
      %vm2746 = vcmp.gt.f32.partialorder %v2742, 0.0
      %vm2747 = vcmp.gt.f32.partialorder %v2743, 0.0
      %vm2748 = vcmp.gt.f32.partialorder %v2744, 0.0
      %vm2749 = vcmp.gt.f32.partialorder %v2745, 0.0
      %v2750 = vsel %vm2746, %v2733, -1e+22
      %v2751 = vsel %vm2747, %v2734, -1e+22
      %v2752 = vsel %vm2748, %v2735, -1e+22
      %v2753 = vsel %vm2749, %v2736, -1e+22
      %vm2754 = vcmask 523264
      %v2755 = vsel %vm2754, %v2750, -inf
      %2756 = vmax.xlane.f32.xlu0 %v2755
      %v2757 = vpop.xlane.xlu0 %2756
      %v2758 = vsel %vm2754, %v2751, -inf
      %2759 = vmax.xlane.f32.xlu0 %v2758
      %v2760 = vpop.xlane.xlu0 %2759
      %v2761 = vsel %vm2754, %v2752, -inf
      %2762 = vmax.xlane.f32.xlu0 %v2761
      %v2763 = vpop.xlane.xlu0 %2762
      %v2764 = vsel %vm2754, %v2753, -inf
      %2765 = vmax.xlane.f32.xlu0 %v2764
      %v2766 = vpop.xlane.xlu0 %2765
      %v2767 = vsub.f32 %v2750, %v2757
      %v2768 = vsub.f32 %v2751, %v2760
      %v2769 = vsub.f32 %v2752, %v2763
      %v2770 = vsub.f32 %v2753, %v2766
      %v2771 = vmul.f32 %v2767, 1.442695
      %v2772 = vpow.pop %v2771
      %v2773 = vmul.f32 %v2768, 1.442695
      %v2774 = vpow.pop %v2773
      %v2775 = vmul.f32 %v2769, 1.442695
      %v2776 = vpow.pop %v2775
      %v2777 = vmul.f32 %v2770, 1.442695
      %v2778 = vpow.pop %v2777
      %v2779 = vsel %vm2754, %v2772, 0.0
      %2780 = vadd.xlane.f32.xlu0 %v2779
      %v2781 = vpop.xlane.xlu0 %2780
      %v2782 = vsel %vm2754, %v2774, 0.0
      %2783 = vadd.xlane.f32.xlu0 %v2782
      %v2784 = vpop.xlane.xlu0 %2783
      %v2785 = vsel %vm2754, %v2776, 0.0
      %2786 = vadd.xlane.f32.xlu0 %v2785
      %v2787 = vpop.xlane.xlu0 %2786
      %v2788 = vsel %vm2754, %v2778, 0.0
      %2789 = vadd.xlane.f32.xlu0 %v2788
      %v2790 = vpop.xlane.xlu0 %2789
      %v2791 = vrcp.pop %v2781
      %v2792 = vmul.f32 %v2772, %v2791
      %v2793 = vrcp.pop %v2784
      %v2794 = vmul.f32 %v2774, %v2793
      %v2795 = vrcp.pop %v2787
      %v2796 = vmul.f32 %v2776, %v2795
      %v2797 = vrcp.pop %v2790
      %v2798 = vmul.f32 %v2778, %v2797
      %v2799 = vpack.c.bf16 %v2794, %v2792
      %v2800 = vpack.c.bf16 %v2798, %v2796
      %v2801 = vld [vmem:[%s316] sm:$0xf]
      %v2802 = vld [vmem:[%s316 + $0x4] sm:$0xf]
      %v2803 = vld [vmem:[%s316 + $0x8] sm:$0xf]
      %v2804 = vld [vmem:[%s316 + $0xc] sm:$0xf]
      %v2805 = vld [vmem:[%s316 + $0x10] sm:$0xf]
      %v2806 = vld [vmem:[%s316 + $0x14] sm:$0xf]
      %v2807 = vld [vmem:[%s316 + $0x18] sm:$0xf]
      %v2808 = vld [vmem:[%s316 + $0x1c] sm:$0xf]
      %v2817 = vunpack.c.l.b16 %v2801
      %v2818 = vunpack.c.l.b16 %v2802
      %v2819 = vunpack.c.l.b16 %v2803
      %v2820 = vunpack.c.l.b16 %v2804
      %v2821 = vunpack.c.l.b16 %v2805
      %v2822 = vunpack.c.l.b16 %v2806
      %v2823 = vunpack.c.l.b16 %v2807
      %v2824 = vunpack.c.l.b16 %v2808
      %v2825 = vpack.c.b16 %v2818, %v2817
      %v2826 = vpack.c.b16 %v2820, %v2819
      %v2827 = vpack.c.b16 %v2822, %v2821
      %v2828 = vpack.c.b16 %v2824, %v2823
      %v2834 = vsel %vm2754, %v2799, 0
      %v2837 = vsel %vm2754, %v2800, 0
      %2839 = vmatprep.subr.bf16.mxu0 0
      %2840 = vmatpush1.bf16.msra.mxu0 %v2825
      %2841 = vmatprep.subr.bf16.mxu0 0
      %2842 = vmatpush1.bf16.msra.mxu0 %v2826
      %2843 = vmatprep.subr.bf16.mxu0 0
      %2844 = vmatpush1.bf16.msra.mxu0 %v2827
      %2845 = vmatprep.subr.bf16.mxu0 0
      %2846 = vmatpush1.bf16.msra.mxu0 %v2828
      %2847 = vmatprep.subr.bf16.mxu0 0
      %2848 = vmatpush1.bf16.msra.mxu0 0
      %2849 = vmatprep.subr.bf16.mxu0 0
      %2850 = vmatpush1.bf16.msra.mxu0 0
      %2851 = vmatprep.subr.bf16.mxu0 0
      %2852 = vmatpush1.bf16.msra.mxu0 0
      %2853 = vmatprep.subr.bf16.mxu0 0
      %2854 = vmatpush1.bf16.msra.mxu0 0
      %2855 = vmatprep.subr.bf16.mxu0 0
      %2856 = vmatpush1.bf16.msra.mxu0 0
      %2857 = vmatprep.subr.bf16.mxu0 0
      %2858 = vmatpush1.bf16.msra.mxu0 0
      %2859 = vmatprep.subr.bf16.mxu0 0
      %2860 = vmatpush1.bf16.msra.mxu0 0
      %2861 = vmatprep.subr.bf16.mxu0 0
      %2862 = vmatpush1.bf16.msra.mxu0 0
      %2863 = vmatprep.subr.bf16.mxu0 0
      %2864 = vmatpush1.bf16.msra.mxu0 0
      %2865 = vmatprep.subr.bf16.mxu0 0
      %2866 = vmatpush1.bf16.msra.mxu0 0
      %2867 = vmatprep.subr.bf16.mxu0 0
      %2868 = vmatpush1.bf16.msra.mxu0 0
      %2869 = vmatprep.subr.bf16.mxu0 0
      %2870 = vmatpush1.bf16.msra.mxu0 0
      %2871 = vmatprep.mubr.bf16.mxu0 0
      %2872 = vmatmul.mubr.bf16.gmra.mrb[0].mxu0 %v2834
      %v2873 = vpop.f32.mrb[0].mxu0
      %v2874 = vadd.f32 0.0, %v2873
      %v2875 = vpop.f32.mrb[0].mxu0
      %v2876 = vpop.f32.mrb[0].mxu0
      %v2877 = vadd.f32 0.0, %v2876
      %v2878 = vpop.f32.mrb[0].mxu0
      %2879 = vmatprep.mubr.bf16.mxu0 0
      %2880 = vmatmul.mubr.bf16.gmra.mrb[0].mxu0 %v2837
      %v2881 = vpop.f32.mrb[0].mxu0
      %v2882 = vadd.f32 0.0, %v2881
      %v2883 = vpop.f32.mrb[0].mxu0
      %v2884 = vpop.f32.mrb[0].mxu0
      %v2885 = vadd.f32 0.0, %v2884
      %v2886 = vpop.f32.mrb[0].mxu0
      %2887 = vdwg.mxu0
      %vm2888 = vcmask 130048
      %2889 = vst.msk [vmem:[%s333] sm:$0xff] %vm2888, %v2874
      %2890 = vst.msk [vmem:[%s333 + $0x8] sm:$0xff] %vm2888, %v2877
      %2891 = vst.msk [vmem:[%s333 + $0x10] sm:$0xff] %vm2888, %v2882
      %2892 = vst.msk [vmem:[%s333 + $0x18] sm:$0xff] %vm2888, %v2885
      %s2893 = smul.u32 4, %s21
      %p2894 = scmp.lt.s32.totalorder %s20, 1
      %s2895 = scalar_select %p2894, %s20, 1
      %p2896 = scmp.lt.s32.totalorder %s2893, 7
      %s2897 = scalar_select %p2896, %s2893, 7
      %s2898 = smul.addr %s2895, 8
      %s2899 = sadd.s32 %s2897, %s2898
      %s2900 = smul.addr %s2899, 8
      %s2901 = scalar_lea.vmem %s5, %s2900
      // Predicated region
      $region41: #{tpu_custom_call.1} parent=39 // pred_check
        %p2902 = pneg %p177
      $region42: #{tpu_custom_call.1} parent=39 // pred_check_branch
        %2904 = sbr.rel (%p2902) target = $region44
      $region43: #{tpu_custom_call.1} parent=39 // pred_region
        %s2905 = smul.u32 4, %s21
      $region44: #{tpu_custom_call.1} parent=39 // pred_fallthru
        _
    $region40: #{tpu_custom_call.1} parent=5 // pred_fallthru
      _
    %p2906 = scmp.le.s32.totalorder 2, %s11
    // Predicated region
    $region45: #{tpu_custom_call.1} parent=5 // pred_check
      %p2907 = pneg %p2906
    $region46: #{tpu_custom_call.1} parent=5 // pred_check_branch
      %2909 = sbr.rel (%p2907) target = $region48
    $region47: #{tpu_custom_call.1} parent=5 // pred_region
      %s2910 = ssub.s32 %s11, 2
      // Predicated region
      $region49: #{tpu_custom_call.1} parent=47 // pred_check
        %p2911 = pneg %p183
      $region50: #{tpu_custom_call.1} parent=47 // pred_check_branch
        %2913 = sbr.rel (%p2911) target = $region52
      $region51: #{tpu_custom_call.1} parent=47 // pred_region
        %s2914 = smul.u32 4, %s23
        %p2915 = scmp.lt.s32.totalorder %s22, 1
        %s2916 = scalar_select %p2915, %s22, 1
        %p2917 = scmp.lt.s32.totalorder %s2914, 7
        %s2918 = scalar_select %p2917, %s2914, 7
        %s2919 = smul.addr %s2916, 8
        %s2920 = sadd.s32 %s2918, %s2919
        %s2921 = smul.addr %s2920, 8
        %s2922 = scalar_lea.vmem %s5, %s2921
      $region52: #{tpu_custom_call.1} parent=47 // pred_fallthru
        _
    $region48: #{tpu_custom_call.1} parent=5 // pred_fallthru
      _
  $region6: #{tpu_custom_call.1} parent=0 // loop_footer
    %s15 = sadd.s32 1, %s11
  $region7: #{tpu_custom_call.1} parent=0 // loop_footer_branch
    %10 = sbr.rel target = $region3
  $region8: #{tpu_custom_call.1} parent=0 // loop_exit
    _

</llo_original>
